<compile_context>
chip_gen: v5e
topology: v5e:2x2
jax: 0.10.0
libtpu: 0.0.40
codegen_flags: <defaults>
</compile_context>

<pallas_src>
import jax
import jax.numpy as jnp
import numpy as np
from jax.experimental import pallas as pl
from jax.experimental.pallas import tpu as pltpu


def dwconv3d_kernel(x_below_ref, x_mid_ref, x_above_ref, w_ref, b_ref, o_ref):
    """Computes one (H, W, c_block) output plane.

    x_*_ref : (H+2, W+2, CB)  zero-padded input planes at depth d-1, d, d+1
    w_ref   : (27, CB)        depthwise weights, row = kd*9 + kh*3 + kw
    b_ref   : (1, CB)         bias
    o_ref   : (H, W, CB)      output plane
    """
    H, W, CB = o_ref.shape
    planes = (x_below_ref, x_mid_ref, x_above_ref)  # kd = 0, 1, 2

    # Hoist the weight / bias casts out of the 27-tap loop: one cast per grid
    # step instead of 27 per output row.
    w_f32 = w_ref[...].astype(jnp.float32)   # (27, CB)
    b_f32 = b_ref[...].astype(jnp.float32)   # (1, CB)

    def row_body(h, carry):
        # Register-resident (W, CB) f32 accumulator for one output row,
        # initialized with the bias.
        acc = jnp.broadcast_to(b_f32, (W, CB))
        for kd in range(3):                      # static: 3 depth planes
            plane_ref = planes[kd]
            for kh in range(3):                  # static: 3 input rows
                # One aligned (W+2, CB) load straight from VMEM, cast once,
                # reused by the three kw taps.
                row = plane_ref[h + kh].astype(jnp.float32)
                for kw in range(3):
                    k = kd * 9 + kh * 3 + kw
                    wv = w_f32[k:k + 1, :]       # (1, CB) per-channel weight
                    acc = acc + row[kw:kw + W, :] * wv
        o_ref[h] = acc.astype(o_ref.dtype)
        return carry

    jax.lax.fori_loop(0, H, row_body, 0)


def dwconv3d(x_ncdhw, weight, bias, *, c_block=128):
    """Depthwise Conv3d(k=3, s=1, p=1, groups=C) + bias.

    x_ncdhw : (B, C, D, H, W)   -- PyTorch NCDHW layout
    weight  : (C, 1, 3, 3, 3)   -- PyTorch depthwise Conv3d weight
    bias    : (C,)
    returns : (B, C, D, H, W)
    """
    B, C, D, H, W = x_ncdhw.shape
    if C % c_block != 0:
        c_block = C                      # small / odd channel counts: one block
    n_c = C // c_block

    # Glue (still XLA): channels-last + zero halo of 1 on each spatial side.
    x = jnp.transpose(x_ncdhw, (0, 2, 3, 4, 1))                  # (B, D, H, W, C)
    xp = jnp.pad(x, ((0, 0), (1, 1), (1, 1), (1, 1), (0, 0)))    # (B, D+2, H+2, W+2, C)
    w = jnp.transpose(weight[:, 0], (1, 2, 3, 0)).reshape(27, C)  # (27, C)
    b2 = bias.reshape(1, C)

    def plane_spec(off):
        # Padded input plane at depth index d + off (off = 0, 1, 2 gives the
        # d-1 / d / d+1 halo planes; block size 1 along D, so the block index
        # is the element index -- no unblocked indexing needed).
        return pl.BlockSpec(
            (None, None, H + 2, W + 2, c_block),
            lambda bb, cc, dd, off=off: (bb, dd + off, 0, 0, cc))

    out = pl.pallas_call(
        dwconv3d_kernel,
        out_shape=jax.ShapeDtypeStruct((B, D, H, W, C), x.dtype),
        grid=(B, n_c, D),
        in_specs=[
            plane_spec(0),   # depth d-1
            plane_spec(1),   # depth d
            plane_spec(2),   # depth d+1
            pl.BlockSpec((27, c_block), lambda bb, cc, dd: (0, cc)),
            pl.BlockSpec((1, c_block), lambda bb, cc, dd: (0, cc)),
        ],
        out_specs=pl.BlockSpec((None, None, H, W, c_block),
                               lambda bb, cc, dd: (bb, dd, 0, 0, cc)),
        compiler_params=pltpu.CompilerParams(
            dimension_semantics=("parallel", "parallel", "parallel")),
    )(xp, xp, xp, w, b2)

    return jnp.transpose(out, (0, 4, 1, 2, 3))                   # back to NCDHW


def reference_dwconv3d(x_ncdhw, weight, bias):
    """Pure-JAX reference (lax grouped conv) for correctness checking."""
    C = x_ncdhw.shape[1]
    y = jax.lax.conv_general_dilated(
        x_ncdhw, weight,
        window_strides=(1, 1, 1),
        padding=((1, 1), (1, 1), (1, 1)),
        dimension_numbers=("NCDHW", "OIDHW", "NCDHW"),
        feature_group_count=C,
    )
    return y + bias.reshape(1, C, 1, 1, 1)


if __name__ == "__main__":
    # Small deterministic shapes; C=256 exercises the lane-dense 128-wide
    # channel tiling (n_c = 2) and D=6 exercises the per-plane depth tiling.
    B, C, D, H, W = 2, 256, 6, 8, 8

    key = jax.random.PRNGKey(0)
    kx, kw, kb = jax.random.split(key, 3)

    x = jax.random.normal(kx, (B, C, D, H, W), dtype=jnp.float32)
    fan_in = 1 * 3 * 3 * 3
    bound = 1.0 / np.sqrt(fan_in)
    weight = jax.random.uniform(kw, (C, 1, 3, 3, 3), dtype=jnp.float32,
                                minval=-bound, maxval=bound)
    bias = jax.random.uniform(kb, (C,), dtype=jnp.float32,
                              minval=-bound, maxval=bound)

    out = dwconv3d(x, weight, bias)
    out = jax.block_until_ready(out)

    ref = jax.block_until_ready(reference_dwconv3d(x, weight, bias))
    assert out.shape == (B, C, D, H, W)
    np.testing.assert_allclose(np.asarray(out), np.asarray(ref),
                               rtol=1e-5, atol=1e-5)

    print("KERNEL_OK")
</pallas_src>

<mosaic_0001>
module attributes {stable_mosaic.version = 11 : i64} {
  func.func @dwconv3d_kernel(%arg0: i32, %arg1: i32, %arg2: i32, %arg3: memref<1x1x10x10x128xf32, #tpu.memory_space<vmem>>, %arg4: memref<1x1x10x10x128xf32, #tpu.memory_space<vmem>>, %arg5: memref<1x1x10x10x128xf32, #tpu.memory_space<vmem>>, %arg6: memref<27x128xf32, #tpu.memory_space<vmem>>, %arg7: memref<1x128xf32, #tpu.memory_space<vmem>>, %arg8: memref<1x1x8x8x128xf32, #tpu.memory_space<vmem>>) attributes {dimension_semantics = [#tpu.dimension_semantics<parallel>, #tpu.dimension_semantics<parallel>, #tpu.dimension_semantics<parallel>], iteration_bounds = array<i64: 2, 2, 6>, scalar_prefetch = 0 : i64, scratch_operands = 0 : i64, tpu.core_type = #tpu.core_type<tc>, window_params = [{transform_indices = @transform_0, window_bounds = array<i64: 1, 1, 10, 10, 128>}, {transform_indices = @transform_1, window_bounds = array<i64: 1, 1, 10, 10, 128>}, {transform_indices = @transform_2, window_bounds = array<i64: 1, 1, 10, 10, 128>}, {transform_indices = @transform_3, window_bounds = array<i64: 27, 128>}, {transform_indices = @transform_4, window_bounds = array<i64: 1, 128>}, {transform_indices = @transform_5, window_bounds = array<i64: 1, 1, 8, 8, 128>}]} {
    %c0 = arith.constant 0 : index
    %c0_0 = arith.constant 0 : index
    %0 = vector.load %arg6[%c0, %c0_0] : memref<27x128xf32, #tpu.memory_space<vmem>>, vector<27x128xf32>
    %c0_1 = arith.constant 0 : index
    %c0_2 = arith.constant 0 : index
    %1 = vector.load %arg7[%c0_1, %c0_2] : memref<1x128xf32, #tpu.memory_space<vmem>>, vector<1x128xf32>
    %c0_i32 = arith.constant 0 : i32
    %c8_i32 = arith.constant 8 : i32
    %2 = arith.addi %c0_i32, %c8_i32 : i32
    %c1_i32 = arith.constant 1 : i32
    scf.for %arg9 = %c0_i32 to %2 step %c1_i32  : i32 {
      %3 = vector.shape_cast %1 : vector<1x128xf32> to vector<1x128xf32>
      %4 = vector.broadcast %3 : vector<1x128xf32> to vector<8x128xf32>
      %c0_i32_4 = arith.constant 0 : i32
      %5 = arith.addi %arg9, %c0_i32_4 : i32
      %c0_5 = arith.constant 0 : index
      %c0_6 = arith.constant 0 : index
      %6 = arith.index_cast %5 : i32 to index
      %c0_7 = arith.constant 0 : index
      %c0_8 = arith.constant 0 : index
      %7 = vector.load %arg3[%c0_5, %c0_6, %6, %c0_7, %c0_8] : memref<1x1x10x10x128xf32, #tpu.memory_space<vmem>>, vector<1x1x1x10x128xf32>
      %8 = vector.shape_cast %7 : vector<1x1x1x10x128xf32> to vector<10x128xf32>
      %9 = vector.extract_strided_slice %0 {offsets = [0, 0], sizes = [1, 128], strides = [1, 1]} : vector<27x128xf32> to vector<1x128xf32>
      %10 = vector.extract_strided_slice %8 {offsets = [0, 0], sizes = [8, 128], strides = [1, 1]} : vector<10x128xf32> to vector<8x128xf32>
      %11 = vector.broadcast %9 : vector<1x128xf32> to vector<8x128xf32>
      %12 = arith.mulf %10, %11 : vector<8x128xf32>
      %13 = arith.addf %4, %12 : vector<8x128xf32>
      %14 = vector.extract_strided_slice %0 {offsets = [1, 0], sizes = [1, 128], strides = [1, 1]} : vector<27x128xf32> to vector<1x128xf32>
      %15 = vector.extract_strided_slice %8 {offsets = [1, 0], sizes = [8, 128], strides = [1, 1]} : vector<10x128xf32> to vector<8x128xf32>
      %16 = vector.broadcast %14 : vector<1x128xf32> to vector<8x128xf32>
      %17 = arith.mulf %15, %16 : vector<8x128xf32>
      %18 = arith.addf %13, %17 : vector<8x128xf32>
      %19 = vector.extract_strided_slice %0 {offsets = [2, 0], sizes = [1, 128], strides = [1, 1]} : vector<27x128xf32> to vector<1x128xf32>
      %20 = vector.extract_strided_slice %8 {offsets = [2, 0], sizes = [8, 128], strides = [1, 1]} : vector<10x128xf32> to vector<8x128xf32>
      %21 = vector.broadcast %19 : vector<1x128xf32> to vector<8x128xf32>
      %22 = arith.mulf %20, %21 : vector<8x128xf32>
      %23 = arith.addf %18, %22 : vector<8x128xf32>
      %c1_i32_9 = arith.constant 1 : i32
      %24 = arith.addi %arg9, %c1_i32_9 : i32
      %c0_10 = arith.constant 0 : index
      %c0_11 = arith.constant 0 : index
      %25 = arith.index_cast %24 : i32 to index
      %c0_12 = arith.constant 0 : index
      %c0_13 = arith.constant 0 : index
      %26 = vector.load %arg3[%c0_10, %c0_11, %25, %c0_12, %c0_13] : memref<1x1x10x10x128xf32, #tpu.memory_space<vmem>>, vector<1x1x1x10x128xf32>
      %27 = vector.shape_cast %26 : vector<1x1x1x10x128xf32> to vector<10x128xf32>
      %28 = vector.extract_strided_slice %0 {offsets = [3, 0], sizes = [1, 128], strides = [1, 1]} : vector<27x128xf32> to vector<1x128xf32>
      %29 = vector.extract_strided_slice %27 {offsets = [0, 0], sizes = [8, 128], strides = [1, 1]} : vector<10x128xf32> to vector<8x128xf32>
      %30 = vector.broadcast %28 : vector<1x128xf32> to vector<8x128xf32>
      %31 = arith.mulf %29, %30 : vector<8x128xf32>
      %32 = arith.addf %23, %31 : vector<8x128xf32>
      %33 = vector.extract_strided_slice %0 {offsets = [4, 0], sizes = [1, 128], strides = [1, 1]} : vector<27x128xf32> to vector<1x128xf32>
      %34 = vector.extract_strided_slice %27 {offsets = [1, 0], sizes = [8, 128], strides = [1, 1]} : vector<10x128xf32> to vector<8x128xf32>
      %35 = vector.broadcast %33 : vector<1x128xf32> to vector<8x128xf32>
      %36 = arith.mulf %34, %35 : vector<8x128xf32>
      %37 = arith.addf %32, %36 : vector<8x128xf32>
      %38 = vector.extract_strided_slice %0 {offsets = [5, 0], sizes = [1, 128], strides = [1, 1]} : vector<27x128xf32> to vector<1x128xf32>
      %39 = vector.extract_strided_slice %27 {offsets = [2, 0], sizes = [8, 128], strides = [1, 1]} : vector<10x128xf32> to vector<8x128xf32>
      %40 = vector.broadcast %38 : vector<1x128xf32> to vector<8x128xf32>
      %41 = arith.mulf %39, %40 : vector<8x128xf32>
      %42 = arith.addf %37, %41 : vector<8x128xf32>
      %c2_i32 = arith.constant 2 : i32
      %43 = arith.addi %arg9, %c2_i32 : i32
      %c0_14 = arith.constant 0 : index
      %c0_15 = arith.constant 0 : index
      %44 = arith.index_cast %43 : i32 to index
      %c0_16 = arith.constant 0 : index
      %c0_17 = arith.constant 0 : index
      %45 = vector.load %arg3[%c0_14, %c0_15, %44, %c0_16, %c0_17] : memref<1x1x10x10x128xf32, #tpu.memory_space<vmem>>, vector<1x1x1x10x128xf32>
      %46 = vector.shape_cast %45 : vector<1x1x1x10x128xf32> to vector<10x128xf32>
      %47 = vector.extract_strided_slice %0 {offsets = [6, 0], sizes = [1, 128], strides = [1, 1]} : vector<27x128xf32> to vector<1x128xf32>
      %48 = vector.extract_strided_slice %46 {offsets = [0, 0], sizes = [8, 128], strides = [1, 1]} : vector<10x128xf32> to vector<8x128xf32>
      %49 = vector.broadcast %47 : vector<1x128xf32> to vector<8x128xf32>
      %50 = arith.mulf %48, %49 : vector<8x128xf32>
      %51 = arith.addf %42, %50 : vector<8x128xf32>
      %52 = vector.extract_strided_slice %0 {offsets = [7, 0], sizes = [1, 128], strides = [1, 1]} : vector<27x128xf32> to vector<1x128xf32>
      %53 = vector.extract_strided_slice %46 {offsets = [1, 0], sizes = [8, 128], strides = [1, 1]} : vector<10x128xf32> to vector<8x128xf32>
      %54 = vector.broadcast %52 : vector<1x128xf32> to vector<8x128xf32>
      %55 = arith.mulf %53, %54 : vector<8x128xf32>
      %56 = arith.addf %51, %55 : vector<8x128xf32>
      %57 = vector.extract_strided_slice %0 {offsets = [8, 0], sizes = [1, 128], strides = [1, 1]} : vector<27x128xf32> to vector<1x128xf32>
      %58 = vector.extract_strided_slice %46 {offsets = [2, 0], sizes = [8, 128], strides = [1, 1]} : vector<10x128xf32> to vector<8x128xf32>
      %59 = vector.broadcast %57 : vector<1x128xf32> to vector<8x128xf32>
      %60 = arith.mulf %58, %59 : vector<8x128xf32>
      %61 = arith.addf %56, %60 : vector<8x128xf32>
      %c0_i32_18 = arith.constant 0 : i32
      %62 = arith.addi %arg9, %c0_i32_18 : i32
      %c0_19 = arith.constant 0 : index
      %c0_20 = arith.constant 0 : index
      %63 = arith.index_cast %62 : i32 to index
      %c0_21 = arith.constant 0 : index
      %c0_22 = arith.constant 0 : index
      %64 = vector.load %arg4[%c0_19, %c0_20, %63, %c0_21, %c0_22] : memref<1x1x10x10x128xf32, #tpu.memory_space<vmem>>, vector<1x1x1x10x128xf32>
      %65 = vector.shape_cast %64 : vector<1x1x1x10x128xf32> to vector<10x128xf32>
      %66 = vector.extract_strided_slice %0 {offsets = [9, 0], sizes = [1, 128], strides = [1, 1]} : vector<27x128xf32> to vector<1x128xf32>
      %67 = vector.extract_strided_slice %65 {offsets = [0, 0], sizes = [8, 128], strides = [1, 1]} : vector<10x128xf32> to vector<8x128xf32>
      %68 = vector.broadcast %66 : vector<1x128xf32> to vector<8x128xf32>
      %69 = arith.mulf %67, %68 : vector<8x128xf32>
      %70 = arith.addf %61, %69 : vector<8x128xf32>
      %71 = vector.extract_strided_slice %0 {offsets = [10, 0], sizes = [1, 128], strides = [1, 1]} : vector<27x128xf32> to vector<1x128xf32>
      %72 = vector.extract_strided_slice %65 {offsets = [1, 0], sizes = [8, 128], strides = [1, 1]} : vector<10x128xf32> to vector<8x128xf32>
      %73 = vector.broadcast %71 : vector<1x128xf32> to vector<8x128xf32>
      %74 = arith.mulf %72, %73 : vector<8x128xf32>
      %75 = arith.addf %70, %74 : vector<8x128xf32>
      %76 = vector.extract_strided_slice %0 {offsets = [11, 0], sizes = [1, 128], strides = [1, 1]} : vector<27x128xf32> to vector<1x128xf32>
      %77 = vector.extract_strided_slice %65 {offsets = [2, 0], sizes = [8, 128], strides = [1, 1]} : vector<10x128xf32> to vector<8x128xf32>
      %78 = vector.broadcast %76 : vector<1x128xf32> to vector<8x128xf32>
      %79 = arith.mulf %77, %78 : vector<8x128xf32>
      %80 = arith.addf %75, %79 : vector<8x128xf32>
      %c1_i32_23 = arith.constant 1 : i32
      %81 = arith.addi %arg9, %c1_i32_23 : i32
      %c0_24 = arith.constant 0 : index
      %c0_25 = arith.constant 0 : index
      %82 = arith.index_cast %81 : i32 to index
      %c0_26 = arith.constant 0 : index
      %c0_27 = arith.constant 0 : index
      %83 = vector.load %arg4[%c0_24, %c0_25, %82, %c0_26, %c0_27] : memref<1x1x10x10x128xf32, #tpu.memory_space<vmem>>, vector<1x1x1x10x128xf32>
      %84 = vector.shape_cast %83 : vector<1x1x1x10x128xf32> to vector<10x128xf32>
      %85 = vector.extract_strided_slice %0 {offsets = [12, 0], sizes = [1, 128], strides = [1, 1]} : vector<27x128xf32> to vector<1x128xf32>
      %86 = vector.extract_strided_slice %84 {offsets = [0, 0], sizes = [8, 128], strides = [1, 1]} : vector<10x128xf32> to vector<8x128xf32>
      %87 = vector.broadcast %85 : vector<1x128xf32> to vector<8x128xf32>
      %88 = arith.mulf %86, %87 : vector<8x128xf32>
      %89 = arith.addf %80, %88 : vector<8x128xf32>
      %90 = vector.extract_strided_slice %0 {offsets = [13, 0], sizes = [1, 128], strides = [1, 1]} : vector<27x128xf32> to vector<1x128xf32>
      %91 = vector.extract_strided_slice %84 {offsets = [1, 0], sizes = [8, 128], strides = [1, 1]} : vector<10x128xf32> to vector<8x128xf32>
      %92 = vector.broadcast %90 : vector<1x128xf32> to vector<8x128xf32>
      %93 = arith.mulf %91, %92 : vector<8x128xf32>
      %94 = arith.addf %89, %93 : vector<8x128xf32>
      %95 = vector.extract_strided_slice %0 {offsets = [14, 0], sizes = [1, 128], strides = [1, 1]} : vector<27x128xf32> to vector<1x128xf32>
      %96 = vector.extract_strided_slice %84 {offsets = [2, 0], sizes = [8, 128], strides = [1, 1]} : vector<10x128xf32> to vector<8x128xf32>
      %97 = vector.broadcast %95 : vector<1x128xf32> to vector<8x128xf32>
      %98 = arith.mulf %96, %97 : vector<8x128xf32>
      %99 = arith.addf %94, %98 : vector<8x128xf32>
      %c2_i32_28 = arith.constant 2 : i32
      %100 = arith.addi %arg9, %c2_i32_28 : i32
      %c0_29 = arith.constant 0 : index
      %c0_30 = arith.constant 0 : index
      %101 = arith.index_cast %100 : i32 to index
      %c0_31 = arith.constant 0 : index
      %c0_32 = arith.constant 0 : index
      %102 = vector.load %arg4[%c0_29, %c0_30, %101, %c0_31, %c0_32] : memref<1x1x10x10x128xf32, #tpu.memory_space<vmem>>, vector<1x1x1x10x128xf32>
      %103 = vector.shape_cast %102 : vector<1x1x1x10x128xf32> to vector<10x128xf32>
      %104 = vector.extract_strided_slice %0 {offsets = [15, 0], sizes = [1, 128], strides = [1, 1]} : vector<27x128xf32> to vector<1x128xf32>
      %105 = vector.extract_strided_slice %103 {offsets = [0, 0], sizes = [8, 128], strides = [1, 1]} : vector<10x128xf32> to vector<8x128xf32>
      %106 = vector.broadcast %104 : vector<1x128xf32> to vector<8x128xf32>
      %107 = arith.mulf %105, %106 : vector<8x128xf32>
      %108 = arith.addf %99, %107 : vector<8x128xf32>
      %109 = vector.extract_strided_slice %0 {offsets = [16, 0], sizes = [1, 128], strides = [1, 1]} : vector<27x128xf32> to vector<1x128xf32>
      %110 = vector.extract_strided_slice %103 {offsets = [1, 0], sizes = [8, 128], strides = [1, 1]} : vector<10x128xf32> to vector<8x128xf32>
      %111 = vector.broadcast %109 : vector<1x128xf32> to vector<8x128xf32>
      %112 = arith.mulf %110, %111 : vector<8x128xf32>
      %113 = arith.addf %108, %112 : vector<8x128xf32>
      %114 = vector.extract_strided_slice %0 {offsets = [17, 0], sizes = [1, 128], strides = [1, 1]} : vector<27x128xf32> to vector<1x128xf32>
      %115 = vector.extract_strided_slice %103 {offsets = [2, 0], sizes = [8, 128], strides = [1, 1]} : vector<10x128xf32> to vector<8x128xf32>
      %116 = vector.broadcast %114 : vector<1x128xf32> to vector<8x128xf32>
      %117 = arith.mulf %115, %116 : vector<8x128xf32>
      %118 = arith.addf %113, %117 : vector<8x128xf32>
      %c0_i32_33 = arith.constant 0 : i32
      %119 = arith.addi %arg9, %c0_i32_33 : i32
      %c0_34 = arith.constant 0 : index
      %c0_35 = arith.constant 0 : index
      %120 = arith.index_cast %119 : i32 to index
      %c0_36 = arith.constant 0 : index
      %c0_37 = arith.constant 0 : index
      %121 = vector.load %arg5[%c0_34, %c0_35, %120, %c0_36, %c0_37] : memref<1x1x10x10x128xf32, #tpu.memory_space<vmem>>, vector<1x1x1x10x128xf32>
      %122 = vector.shape_cast %121 : vector<1x1x1x10x128xf32> to vector<10x128xf32>
      %123 = vector.extract_strided_slice %0 {offsets = [18, 0], sizes = [1, 128], strides = [1, 1]} : vector<27x128xf32> to vector<1x128xf32>
      %124 = vector.extract_strided_slice %122 {offsets = [0, 0], sizes = [8, 128], strides = [1, 1]} : vector<10x128xf32> to vector<8x128xf32>
      %125 = vector.broadcast %123 : vector<1x128xf32> to vector<8x128xf32>
      %126 = arith.mulf %124, %125 : vector<8x128xf32>
      %127 = arith.addf %118, %126 : vector<8x128xf32>
      %128 = vector.extract_strided_slice %0 {offsets = [19, 0], sizes = [1, 128], strides = [1, 1]} : vector<27x128xf32> to vector<1x128xf32>
      %129 = vector.extract_strided_slice %122 {offsets = [1, 0], sizes = [8, 128], strides = [1, 1]} : vector<10x128xf32> to vector<8x128xf32>
      %130 = vector.broadcast %128 : vector<1x128xf32> to vector<8x128xf32>
      %131 = arith.mulf %129, %130 : vector<8x128xf32>
      %132 = arith.addf %127, %131 : vector<8x128xf32>
      %133 = vector.extract_strided_slice %0 {offsets = [20, 0], sizes = [1, 128], strides = [1, 1]} : vector<27x128xf32> to vector<1x128xf32>
      %134 = vector.extract_strided_slice %122 {offsets = [2, 0], sizes = [8, 128], strides = [1, 1]} : vector<10x128xf32> to vector<8x128xf32>
      %135 = vector.broadcast %133 : vector<1x128xf32> to vector<8x128xf32>
      %136 = arith.mulf %134, %135 : vector<8x128xf32>
      %137 = arith.addf %132, %136 : vector<8x128xf32>
      %c1_i32_38 = arith.constant 1 : i32
      %138 = arith.addi %arg9, %c1_i32_38 : i32
      %c0_39 = arith.constant 0 : index
      %c0_40 = arith.constant 0 : index
      %139 = arith.index_cast %138 : i32 to index
      %c0_41 = arith.constant 0 : index
      %c0_42 = arith.constant 0 : index
      %140 = vector.load %arg5[%c0_39, %c0_40, %139, %c0_41, %c0_42] : memref<1x1x10x10x128xf32, #tpu.memory_space<vmem>>, vector<1x1x1x10x128xf32>
      %141 = vector.shape_cast %140 : vector<1x1x1x10x128xf32> to vector<10x128xf32>
      %142 = vector.extract_strided_slice %0 {offsets = [21, 0], sizes = [1, 128], strides = [1, 1]} : vector<27x128xf32> to vector<1x128xf32>
      %143 = vector.extract_strided_slice %141 {offsets = [0, 0], sizes = [8, 128], strides = [1, 1]} : vector<10x128xf32> to vector<8x128xf32>
      %144 = vector.broadcast %142 : vector<1x128xf32> to vector<8x128xf32>
      %145 = arith.mulf %143, %144 : vector<8x128xf32>
      %146 = arith.addf %137, %145 : vector<8x128xf32>
      %147 = vector.extract_strided_slice %0 {offsets = [22, 0], sizes = [1, 128], strides = [1, 1]} : vector<27x128xf32> to vector<1x128xf32>
      %148 = vector.extract_strided_slice %141 {offsets = [1, 0], sizes = [8, 128], strides = [1, 1]} : vector<10x128xf32> to vector<8x128xf32>
      %149 = vector.broadcast %147 : vector<1x128xf32> to vector<8x128xf32>
      %150 = arith.mulf %148, %149 : vector<8x128xf32>
      %151 = arith.addf %146, %150 : vector<8x128xf32>
      %152 = vector.extract_strided_slice %0 {offsets = [23, 0], sizes = [1, 128], strides = [1, 1]} : vector<27x128xf32> to vector<1x128xf32>
      %153 = vector.extract_strided_slice %141 {offsets = [2, 0], sizes = [8, 128], strides = [1, 1]} : vector<10x128xf32> to vector<8x128xf32>
      %154 = vector.broadcast %152 : vector<1x128xf32> to vector<8x128xf32>
      %155 = arith.mulf %153, %154 : vector<8x128xf32>
      %156 = arith.addf %151, %155 : vector<8x128xf32>
      %c2_i32_43 = arith.constant 2 : i32
      %157 = arith.addi %arg9, %c2_i32_43 : i32
      %c0_44 = arith.constant 0 : index
      %c0_45 = arith.constant 0 : index
      %158 = arith.index_cast %157 : i32 to index
      %c0_46 = arith.constant 0 : index
      %c0_47 = arith.constant 0 : index
      %159 = vector.load %arg5[%c0_44, %c0_45, %158, %c0_46, %c0_47] : memref<1x1x10x10x128xf32, #tpu.memory_space<vmem>>, vector<1x1x1x10x128xf32>
      %160 = vector.shape_cast %159 : vector<1x1x1x10x128xf32> to vector<10x128xf32>
      %161 = vector.extract_strided_slice %0 {offsets = [24, 0], sizes = [1, 128], strides = [1, 1]} : vector<27x128xf32> to vector<1x128xf32>
      %162 = vector.extract_strided_slice %160 {offsets = [0, 0], sizes = [8, 128], strides = [1, 1]} : vector<10x128xf32> to vector<8x128xf32>
      %163 = vector.broadcast %161 : vector<1x128xf32> to vector<8x128xf32>
      %164 = arith.mulf %162, %163 : vector<8x128xf32>
      %165 = arith.addf %156, %164 : vector<8x128xf32>
      %166 = vector.extract_strided_slice %0 {offsets = [25, 0], sizes = [1, 128], strides = [1, 1]} : vector<27x128xf32> to vector<1x128xf32>
      %167 = vector.extract_strided_slice %160 {offsets = [1, 0], sizes = [8, 128], strides = [1, 1]} : vector<10x128xf32> to vector<8x128xf32>
      %168 = vector.broadcast %166 : vector<1x128xf32> to vector<8x128xf32>
      %169 = arith.mulf %167, %168 : vector<8x128xf32>
      %170 = arith.addf %165, %169 : vector<8x128xf32>
      %171 = vector.extract_strided_slice %0 {offsets = [26, 0], sizes = [1, 128], strides = [1, 1]} : vector<27x128xf32> to vector<1x128xf32>
      %172 = vector.extract_strided_slice %160 {offsets = [2, 0], sizes = [8, 128], strides = [1, 1]} : vector<10x128xf32> to vector<8x128xf32>
      %173 = vector.broadcast %171 : vector<1x128xf32> to vector<8x128xf32>
      %174 = arith.mulf %172, %173 : vector<8x128xf32>
      %175 = arith.addf %170, %174 : vector<8x128xf32>
      %c0_48 = arith.constant 0 : index
      %c0_49 = arith.constant 0 : index
      %176 = arith.index_cast %arg9 : i32 to index
      %c0_50 = arith.constant 0 : index
      %c0_51 = arith.constant 0 : index
      %177 = vector.load %arg8[%c0_48, %c0_49, %176, %c0_50, %c0_51] : memref<1x1x8x8x128xf32, #tpu.memory_space<vmem>>, vector<1x1x1x8x128xf32>
      %178 = vector.shape_cast %177 : vector<1x1x1x8x128xf32> to vector<8x128xf32>
      %179 = vector.shape_cast %175 : vector<8x128xf32> to vector<1x1x1x8x128xf32>
      tpu.vector_store %arg8[%c0_48, %c0_49, %176, %c0_50, %c0_51], %179 {strides = array<i32>} : memref<1x1x8x8x128xf32, #tpu.memory_space<vmem>>, vector<1x1x1x8x128xf32>,
    }
    %c8_i32_3 = arith.constant 8 : i32
    return
  }
  func.func @transform_0(%arg0: i32, %arg1: i32, %arg2: i32) -> (i32, i32, i32, i32, i32) {
    %c0_i32 = arith.constant 0 : i32
    %0 = arith.addi %arg2, %c0_i32 : i32
    %c0_i32_0 = arith.constant 0 : i32
    %c0_i32_1 = arith.constant 0 : i32
    %c0_i32_2 = arith.constant 0 : i32
    return %arg0, %0, %c0_i32_0, %c0_i32_1, %arg1 : i32, i32, i32, i32, i32
  }
  func.func @transform_1(%arg0: i32, %arg1: i32, %arg2: i32) -> (i32, i32, i32, i32, i32) {
    %c1_i32 = arith.constant 1 : i32
    %0 = arith.addi %arg2, %c1_i32 : i32
    %c0_i32 = arith.constant 0 : i32
    %c0_i32_0 = arith.constant 0 : i32
    %c0_i32_1 = arith.constant 0 : i32
    return %arg0, %0, %c0_i32, %c0_i32_0, %arg1 : i32, i32, i32, i32, i32
  }
  func.func @transform_2(%arg0: i32, %arg1: i32, %arg2: i32) -> (i32, i32, i32, i32, i32) {
    %c2_i32 = arith.constant 2 : i32
    %0 = arith.addi %arg2, %c2_i32 : i32
    %c0_i32 = arith.constant 0 : i32
    %c0_i32_0 = arith.constant 0 : i32
    %c0_i32_1 = arith.constant 0 : i32
    return %arg0, %0, %c0_i32, %c0_i32_0, %arg1 : i32, i32, i32, i32, i32
  }
  func.func @transform_3(%arg0: i32, %arg1: i32, %arg2: i32) -> (i32, i32) {
    %c0_i32 = arith.constant 0 : i32
    %c0_i32_0 = arith.constant 0 : i32
    return %c0_i32, %arg1 : i32, i32
  }
  func.func @transform_4(%arg0: i32, %arg1: i32, %arg2: i32) -> (i32, i32) {
    %c0_i32 = arith.constant 0 : i32
    %c0_i32_0 = arith.constant 0 : i32
    return %c0_i32, %arg1 : i32, i32
  }
  func.func @transform_5(%arg0: i32, %arg1: i32, %arg2: i32) -> (i32, i32, i32, i32, i32) {
    %c0_i32 = arith.constant 0 : i32
    %c0_i32_0 = arith.constant 0 : i32
    %c0_i32_1 = arith.constant 0 : i32
    return %arg0, %arg2, %c0_i32, %c0_i32_0, %arg1 : i32, i32, i32, i32, i32
  }
}

</mosaic_0001>

<llo_original>
// kernel: tpu_custom_call.1
$region0: #{tpu_custom_call.1}
  #allocation0 [shape = 'u32[]', space=smem, size = 0x4, offset = 0x4, fixed_abs, tag = 'smem constant byte address 0x4 - core index']
  #allocation1 [shape = 'u32[72,128]{1,0:T(1,128)}', space=vmem, size = 0x9000, scoped, tag = 'internal scratch']
  %s0 = inlined_call_operand.vmem [shape: f32[2,8,10,10,256], index: 0, kind: input, shape index: {}]
  %s1 = inlined_call_operand.vmem [shape: f32[2,8,10,10,256], index: 1, kind: input, shape index: {}]
  %s2 = inlined_call_operand.vmem [shape: f32[2,8,10,10,256], index: 2, kind: input, shape index: {}]
  %s3 = inlined_call_operand.vmem [shape: f32[27,256], index: 3, kind: input, shape index: {}]
  %s4 = inlined_call_operand.vmem [shape: f32[1,256], index: 4, kind: input, shape index: {}]
  %s5 = inlined_call_operand.hbm [shape: f32[2,6,8,8,256], index: 5, kind: output, shape index: {}]
  %s6 = sld [smem:[#allocation0]]
  $region212: #{tpu_custom_call.1} parent=0
    _
  %s8 = ssub.s32 1, %s6
  %s9 = scalar_select 0, %s8, %s6
  $region1: #{tpu_custom_call.1} parent=0
    #allocation2 [shape = 'u8[163840]{0}', space=vmem, size = 0x28000, scoped, tag = 'input window, operand 0']
    #allocation3 [shape = 'u8[163840]{0}', space=vmem, size = 0x28000, scoped, tag = 'input window, operand 1']
    #allocation4 [shape = 'u8[163840]{0}', space=vmem, size = 0x28000, scoped, tag = 'input window, operand 2']
    #allocation5 [shape = 'u8[32768]{0}', space=vmem, size = 0x8000, scoped, tag = 'input window, operand 3']
    #allocation6 [shape = 'u8[65536]{0}', space=vmem, size = 0x10000, scoped, tag = 'output window, operand 0']
    #allocation7 [shape = 's32[2]{0}', space=sflag, size = 0x8, scoped, tag = 'scoped memory for tpu_custom_call.1']
    %10 = vsyncpa [#allocation7], 0
    %s11 = scalar_lea.sflag [#allocation7], 1
    %12 = vsyncpa %s11, 0
    loop: start=0, step=1, limit=26
    $region2: #{tpu_custom_call.1} parent=1 // loop_pre_header
      _
    $region3: #{tpu_custom_call.1} parent=1 // loop_header
      %s14 = sphi 0, %s18
      %p15 = scmp.ge.s32.totalorder %s14, 26
      %s21 = sphi 0, %s40
      %s22 = sphi 0, %s36
      %s23 = sphi 0, %s32
      %s24 = sphi 0, %s21
      %s25 = sphi 0, %s22
      %s26 = sphi 0, %s23
      %s27 = sphi 0, %s24
      %s28 = sphi 0, %s25
      %s29 = sphi 0, %s26
      %s47 = sphi 0, %s49
      %s50 = sphi 0, %s47
      %s51 = sphi 0, %s50
      %s67 = sphi 0, %s51
      %s79 = sphi 0, %s81
      %s82 = sphi 0, %s79
      %s83 = sphi 0, %s82
      %s99 = sphi 0, %s83
      %s111 = sphi 0, %s113
      %s114 = sphi 0, %s111
      %s115 = sphi 0, %s114
      %s131 = sphi 0, %s115
      %s137 = sphi 0, %s139
      %s140 = sphi 0, %s137
      %s141 = sphi 0, %s140
      %s157 = sphi 0, %s141
      %s163 = sphi 0, %s165
      %s166 = sphi 0, %s163
      %s167 = sphi 0, %s166
      %s183 = sphi 0, %s167
      %s193 = sphi 0, %s195
      %s196 = sphi 0, %s193
      %s197 = sphi 0, %s196
      %s213 = sphi 0, %s197
    $region4: #{tpu_custom_call.1} parent=1 // loop_header_branch
      %17 = sbr.rel (%p15) target = $region8
    $region5: #{tpu_custom_call.1} parent=1 // loop_body
      %s19 = ssub.s32 %s14, 1
      %s20 = ssub.s32 %s14, 2
      %s30 = sadd.s32 1, %s23
      %p31 = scmp.ge.s32.totalorder %s30, 6
      %s32 = scalar_select %p31, 0, %s30
      %s33 = sadd.s32 1, %s22
      %s34 = scalar_select %p31, %s33, %s22
      %p35 = scmp.ge.s32.totalorder %s34, 2
      %s36 = scalar_select %p35, 0, %s34
      %s37 = sadd.s32 1, %s21
      %s38 = scalar_select %p35, %s37, %s21
      %p39 = scmp.ge.s32.totalorder %s38, 2
      %s40 = scalar_select %p39, 0, %s38
      %s41 = ssub.s32 %s21, %s40
      %s42 = ssub.s32 %s23, %s32
      %s43 = sor.u32 %s41, %s42
      %s44 = ssub.s32 %s22, %s36
      %s45 = sor.u32 %s43, %s44
      %p46 = scmp.eq.s32.totalorder %s45, 0
      %s48 = sadd.s32 %s47, 1
      %s49 = scalar_select %p46, %s47, %s48
      %p52 = pneg %p46
      %p53 = scmp.eq.s32.totalorder %s14, 23
      %p54 = por %p52, %p53
      %p55 = scmp.ne.s32.totalorder %s47, %s50
      %p56 = scmp.eq.s32.totalorder %s14, 0
      %p57 = por %p55, %p56
      %p58 = scmp.ne.s32.totalorder %s47, %s50
      %p59 = scmp.eq.s32.totalorder %s19, 23
      %p60 = por %p58, %p59
      %p61 = scmp.ne.s32.totalorder %s50, %s51
      %p62 = scmp.eq.s32.totalorder %s19, 0
      %p63 = por %p61, %p62
      %p64 = scmp.ne.s32.totalorder %s50, %s51
      %p65 = scmp.eq.s32.totalorder %s20, 23
      %p66 = por %p64, %p65
      %p68 = scmp.ne.s32.totalorder %s51, %s67
      %p69 = scmp.eq.s32.totalorder %s20, 0
      %p70 = por %p68, %p69
      %s71 = sadd.s32 %s23, 1
      %s72 = sadd.s32 %s32, 1
      %s73 = ssub.s32 %s21, %s40
      %s74 = ssub.s32 %s71, %s72
      %s75 = sor.u32 %s73, %s74
      %s76 = ssub.s32 %s22, %s36
      %s77 = sor.u32 %s75, %s76
      %p78 = scmp.eq.s32.totalorder %s77, 0
      %s80 = sadd.s32 %s79, 1
      %s81 = scalar_select %p78, %s79, %s80
      %p84 = pneg %p78
      %p85 = scmp.eq.s32.totalorder %s14, 23
      %p86 = por %p84, %p85
      %p87 = scmp.ne.s32.totalorder %s79, %s82
      %p88 = scmp.eq.s32.totalorder %s14, 0
      %p89 = por %p87, %p88
      %p90 = scmp.ne.s32.totalorder %s79, %s82
      %p91 = scmp.eq.s32.totalorder %s19, 23
      %p92 = por %p90, %p91
      %p93 = scmp.ne.s32.totalorder %s82, %s83
      %p94 = scmp.eq.s32.totalorder %s19, 0
      %p95 = por %p93, %p94
      %p96 = scmp.ne.s32.totalorder %s82, %s83
      %p97 = scmp.eq.s32.totalorder %s20, 23
      %p98 = por %p96, %p97
      %p100 = scmp.ne.s32.totalorder %s83, %s99
      %p101 = scmp.eq.s32.totalorder %s20, 0
      %p102 = por %p100, %p101
      %s103 = sadd.s32 %s23, 2
      %s104 = sadd.s32 %s32, 2
      %s105 = ssub.s32 %s21, %s40
      %s106 = ssub.s32 %s103, %s104
      %s107 = sor.u32 %s105, %s106
      %s108 = ssub.s32 %s22, %s36
      %s109 = sor.u32 %s107, %s108
      %p110 = scmp.eq.s32.totalorder %s109, 0
      %s112 = sadd.s32 %s111, 1
      %s113 = scalar_select %p110, %s111, %s112
      %p116 = pneg %p110
      %p117 = scmp.eq.s32.totalorder %s14, 23
      %p118 = por %p116, %p117
      %p119 = scmp.ne.s32.totalorder %s111, %s114
      %p120 = scmp.eq.s32.totalorder %s14, 0
      %p121 = por %p119, %p120
      %p122 = scmp.ne.s32.totalorder %s111, %s114
      %p123 = scmp.eq.s32.totalorder %s19, 23
      %p124 = por %p122, %p123
      %p125 = scmp.ne.s32.totalorder %s114, %s115
      %p126 = scmp.eq.s32.totalorder %s19, 0
      %p127 = por %p125, %p126
      %p128 = scmp.ne.s32.totalorder %s114, %s115
      %p129 = scmp.eq.s32.totalorder %s20, 23
      %p130 = por %p128, %p129
      %p132 = scmp.ne.s32.totalorder %s115, %s131
      %p133 = scmp.eq.s32.totalorder %s20, 0
      %p134 = por %p132, %p133
      %s135 = ssub.s32 %s22, %s36
      %p136 = scmp.eq.s32.totalorder %s135, 0
      %s138 = sadd.s32 %s137, 1
      %s139 = scalar_select %p136, %s137, %s138
      %p142 = pneg %p136
      %p143 = scmp.eq.s32.totalorder %s14, 23
      %p144 = por %p142, %p143
      %p145 = scmp.ne.s32.totalorder %s137, %s140
      %p146 = scmp.eq.s32.totalorder %s14, 0
      %p147 = por %p145, %p146
      %p148 = scmp.ne.s32.totalorder %s137, %s140
      %p149 = scmp.eq.s32.totalorder %s19, 23
      %p150 = por %p148, %p149
      %p151 = scmp.ne.s32.totalorder %s140, %s141
      %p152 = scmp.eq.s32.totalorder %s19, 0
      %p153 = por %p151, %p152
      %p154 = scmp.ne.s32.totalorder %s140, %s141
      %p155 = scmp.eq.s32.totalorder %s20, 23
      %p156 = por %p154, %p155
      %p158 = scmp.ne.s32.totalorder %s141, %s157
      %p159 = scmp.eq.s32.totalorder %s20, 0
      %p160 = por %p158, %p159
      %s161 = ssub.s32 %s22, %s36
      %p162 = scmp.eq.s32.totalorder %s161, 0
      %s164 = sadd.s32 %s163, 1
      %s165 = scalar_select %p162, %s163, %s164
      %p168 = pneg %p162
      %p169 = scmp.eq.s32.totalorder %s14, 23
      %p170 = por %p168, %p169
      %p171 = scmp.ne.s32.totalorder %s163, %s166
      %p172 = scmp.eq.s32.totalorder %s14, 0
      %p173 = por %p171, %p172
      %p174 = scmp.ne.s32.totalorder %s163, %s166
      %p175 = scmp.eq.s32.totalorder %s19, 23
      %p176 = por %p174, %p175
      %p177 = scmp.ne.s32.totalorder %s166, %s167
      %p178 = scmp.eq.s32.totalorder %s19, 0
      %p179 = por %p177, %p178
      %p180 = scmp.ne.s32.totalorder %s166, %s167
      %p181 = scmp.eq.s32.totalorder %s20, 23
      %p182 = por %p180, %p181
      %p184 = scmp.ne.s32.totalorder %s167, %s183
      %p185 = scmp.eq.s32.totalorder %s20, 0
      %p186 = por %p184, %p185
      %s187 = ssub.s32 %s21, %s40
      %s188 = ssub.s32 %s23, %s32
      %s189 = sor.u32 %s187, %s188
      %s190 = ssub.s32 %s22, %s36
      %s191 = sor.u32 %s189, %s190
      %p192 = scmp.eq.s32.totalorder %s191, 0
      %s194 = sadd.s32 %s193, 1
      %s195 = scalar_select %p192, %s193, %s194
      %p198 = pneg %p192
      %p199 = scmp.eq.s32.totalorder %s14, 23
      %p200 = por %p198, %p199
      %p201 = scmp.ne.s32.totalorder %s193, %s196
      %p202 = scmp.eq.s32.totalorder %s14, 0
      %p203 = por %p201, %p202
      %p204 = scmp.ne.s32.totalorder %s193, %s196
      %p205 = scmp.eq.s32.totalorder %s19, 23
      %p206 = por %p204, %p205
      %p207 = scmp.ne.s32.totalorder %s196, %s197
      %p208 = scmp.eq.s32.totalorder %s19, 0
      %p209 = por %p207, %p208
      %p210 = scmp.ne.s32.totalorder %s196, %s197
      %p211 = scmp.eq.s32.totalorder %s20, 23
      %p212 = por %p210, %p211
      %p214 = scmp.ne.s32.totalorder %s197, %s213
      %p215 = scmp.eq.s32.totalorder %s20, 0
      %p216 = por %p214, %p215
      %p217 = scmp.le.s32.totalorder 1, %s14
      %p218 = scmp.lt.s32.totalorder %s14, 25
      %p219 = pnand %p217, %p218
      %p220 = pneg %p219
      // Predicated region
      $region9: #{tpu_custom_call.1} parent=5 // pred_check
        _
      $region10: #{tpu_custom_call.1} parent=5 // pred_check_branch
        %222 = sbr.rel (%p219) target = $region12
      $region11: #{tpu_custom_call.1} parent=5 // pred_region
        %s223 = ssub.s32 %s14, 1
      $region12: #{tpu_custom_call.1} parent=5 // pred_fallthru
        _
      %p224 = scmp.lt.s32.totalorder %s14, 24
      // Predicated region
      $region13: #{tpu_custom_call.1} parent=5 // pred_check
        %p225 = pneg %p224
      $region14: #{tpu_custom_call.1} parent=5 // pred_check_branch
        %227 = sbr.rel (%p225) target = $region16
      $region15: #{tpu_custom_call.1} parent=5 // pred_region
        // Predicated region
        $region17: #{tpu_custom_call.1} parent=15 // pred_check
          %p228 = pneg %p57
        $region18: #{tpu_custom_call.1} parent=15 // pred_check_branch
          %230 = sbr.rel (%p228) target = $region20
        $region19: #{tpu_custom_call.1} parent=15 // pred_region
          %s231 = sand.u32 %s47, 1
          %s232 = sand.u32 %s47, 1
          %s233 = smul.addr %s232, 160
          %s234 = scalar_lea.vmem [#allocation2], %s233
          %s235 = smul.addr %s23, 40
          %s236 = sadd.s32 %s22, %s235
          %s237 = smul.addr %s21, 320
          %s238 = sadd.s32 %s236, %s237
          %s239 = smul.addr %s238, 8
          %s240 = scalar_lea.vmem %s0, %s239
          // Predicated region
          $region21: #{tpu_custom_call.1} parent=19 // pred_check
            _
          $region22: #{tpu_custom_call.1} parent=19 // pred_check_branch
            %242 = sbr.rel (0) target = $region24
          $region23: #{tpu_custom_call.1} parent=19 // pred_region
            // Predicated region
            $region25: #{tpu_custom_call.1} parent=23 // pred_check
              _
            $region26: #{tpu_custom_call.1} parent=23 // pred_check_branch
              %244 = sbr.rel (0) target = $region28
            $region27: #{tpu_custom_call.1} parent=23 // pred_region
              // Predicated region
              $region40: #{tpu_custom_call.1} parent=27 // pred_check
                _
              $region41: #{tpu_custom_call.1} parent=27 // pred_check_branch
                %298 = sbr.rel (0) target = $region43
              $region42: #{tpu_custom_call.1} parent=27 // pred_region
                loop: start=0, step=1, limit=1
                $region44: #{tpu_custom_call.1} parent=42 // loop_pre_header
                  _
                $region45: #{tpu_custom_call.1} parent=42 // loop_header
                  %s300 = sphi 0, %s304
                  %p301 = scmp.ge.s32.totalorder %s300, 1
                  %s305 = sphi %s240, %s240
                  %s306 = sphi %s234, %s234
                $region46: #{tpu_custom_call.1} parent=42 // loop_header_branch
                  %303 = sbr.rel (%p301) target = $region50
                $region47: #{tpu_custom_call.1} parent=42 // loop_body
                  %v307 = vld [vmem:[%s305] sm:$0xff]
                  %308 = vst [vmem:[%s306] sm:$0xff] %v307
                  %v309 = vld [vmem:[%s305 + $0x10] sm:$0xff]
                  %310 = vst [vmem:[%s306 + $0x8] sm:$0xff] %v309
                  %v311 = vld [vmem:[%s305 + $0x20] sm:$0xff]
                  %312 = vst [vmem:[%s306 + $0x10] sm:$0xff] %v311
                  %v313 = vld [vmem:[%s305 + $0x30] sm:$0xff]
                  %314 = vst [vmem:[%s306 + $0x18] sm:$0xff] %v313
                  %v315 = vld [vmem:[%s305 + $0x40] sm:$0xff]
                  %316 = vst [vmem:[%s306 + $0x20] sm:$0xff] %v315
                  %v317 = vld [vmem:[%s305 + $0x50] sm:$0xff]
                  %318 = vst [vmem:[%s306 + $0x28] sm:$0xff] %v317
                  %v319 = vld [vmem:[%s305 + $0x60] sm:$0xff]
                  %320 = vst [vmem:[%s306 + $0x30] sm:$0xff] %v319
                  %v321 = vld [vmem:[%s305 + $0x70] sm:$0xff]
                  %322 = vst [vmem:[%s306 + $0x38] sm:$0xff] %v321
                  %v323 = vld [vmem:[%s305 + $0x80] sm:$0xff]
                  %324 = vst [vmem:[%s306 + $0x40] sm:$0xff] %v323
                  %v325 = vld [vmem:[%s305 + $0x90] sm:$0xff]
                  %326 = vst [vmem:[%s306 + $0x48] sm:$0xff] %v325
                  %v327 = vld [vmem:[%s305 + $0xa0] sm:$0xff]
                  %328 = vst [vmem:[%s306 + $0x50] sm:$0xff] %v327
                  %v329 = vld [vmem:[%s305 + $0xb0] sm:$0xff]
                  %330 = vst [vmem:[%s306 + $0x58] sm:$0xff] %v329
                  %v331 = vld [vmem:[%s305 + $0xc0] sm:$0xff]
                  %332 = vst [vmem:[%s306 + $0x60] sm:$0xff] %v331
                  %v333 = vld [vmem:[%s305 + $0xd0] sm:$0xff]
                  %334 = vst [vmem:[%s306 + $0x68] sm:$0xff] %v333
                  %v335 = vld [vmem:[%s305 + $0xe0] sm:$0xff]
                  %336 = vst [vmem:[%s306 + $0x70] sm:$0xff] %v335
                  %v337 = vld [vmem:[%s305 + $0xf0] sm:$0xff]
                  %338 = vst [vmem:[%s306 + $0x78] sm:$0xff] %v337
                  %v339 = vld [vmem:[%s305 + $0x100] sm:$0xff]
                  %340 = vst [vmem:[%s306 + $0x80] sm:$0xff] %v339
                  %v341 = vld [vmem:[%s305 + $0x110] sm:$0xff]
                  %342 = vst [vmem:[%s306 + $0x88] sm:$0xff] %v341
                  %v343 = vld [vmem:[%s305 + $0x120] sm:$0xff]
                  %344 = vst [vmem:[%s306 + $0x90] sm:$0xff] %v343
                  %v345 = vld [vmem:[%s305 + $0x130] sm:$0xff]
                  %346 = vst [vmem:[%s306 + $0x98] sm:$0xff] %v345
                $region48: #{tpu_custom_call.1} parent=42 // loop_footer
                  %s304 = sadd.s32 1, %s300
                $region49: #{tpu_custom_call.1} parent=42 // loop_footer_branch
                  %299 = sbr.rel target = $region45
                $region50: #{tpu_custom_call.1} parent=42 // loop_exit
                  _
              $region43: #{tpu_custom_call.1} parent=27 // pred_fallthru
                _
              // Predicated region
              $region51: #{tpu_custom_call.1} parent=27 // pred_check
                _
              $region52: #{tpu_custom_call.1} parent=27 // pred_check_branch
                %348 = sbr.rel target = $region54
              $region53: #{tpu_custom_call.1} parent=27 // pred_region
                _
              $region54: #{tpu_custom_call.1} parent=27 // pred_fallthru
                _
            $region28: #{tpu_custom_call.1} parent=23 // pred_fallthru
              _
            // Predicated region
            $region29: #{tpu_custom_call.1} parent=23 // pred_check
              _
            $region30: #{tpu_custom_call.1} parent=23 // pred_check_branch
              %246 = sbr.rel target = $region32
            $region31: #{tpu_custom_call.1} parent=23 // pred_region
              %s248 = ssub.s32 256, 1
              loop: start=0, step=1, limit=1
              $region33: #{tpu_custom_call.1} parent=31 // loop_pre_header
                _
              $region34: #{tpu_custom_call.1} parent=31 // loop_header
                %s250 = sphi 0, %s254
                %p251 = scmp.ge.s32.totalorder %s250, 1
                %s255 = sphi %s240, %s240
                %s256 = sphi %s234, %s234
              $region35: #{tpu_custom_call.1} parent=31 // loop_header_branch
                %253 = sbr.rel (%p251) target = $region39
              $region36: #{tpu_custom_call.1} parent=31 // loop_body
                %v257 = vld [vmem:[%s255] sm:%s248]
                %258 = vst [vmem:[%s256] sm:%s248] %v257
                %v259 = vld [vmem:[%s255 + $0x10] sm:%s248]
                %260 = vst [vmem:[%s256 + $0x8] sm:%s248] %v259
                %v261 = vld [vmem:[%s255 + $0x20] sm:%s248]
                %262 = vst [vmem:[%s256 + $0x10] sm:%s248] %v261
                %v263 = vld [vmem:[%s255 + $0x30] sm:%s248]
                %264 = vst [vmem:[%s256 + $0x18] sm:%s248] %v263
                %v265 = vld [vmem:[%s255 + $0x40] sm:%s248]
                %266 = vst [vmem:[%s256 + $0x20] sm:%s248] %v265
                %v267 = vld [vmem:[%s255 + $0x50] sm:%s248]
                %268 = vst [vmem:[%s256 + $0x28] sm:%s248] %v267
                %v269 = vld [vmem:[%s255 + $0x60] sm:%s248]
                %270 = vst [vmem:[%s256 + $0x30] sm:%s248] %v269
                %v271 = vld [vmem:[%s255 + $0x70] sm:%s248]
                %272 = vst [vmem:[%s256 + $0x38] sm:%s248] %v271
                %v273 = vld [vmem:[%s255 + $0x80] sm:%s248]
                %274 = vst [vmem:[%s256 + $0x40] sm:%s248] %v273
                %v275 = vld [vmem:[%s255 + $0x90] sm:%s248]
                %276 = vst [vmem:[%s256 + $0x48] sm:%s248] %v275
                %v277 = vld [vmem:[%s255 + $0xa0] sm:%s248]
                %278 = vst [vmem:[%s256 + $0x50] sm:%s248] %v277
                %v279 = vld [vmem:[%s255 + $0xb0] sm:%s248]
                %280 = vst [vmem:[%s256 + $0x58] sm:%s248] %v279
                %v281 = vld [vmem:[%s255 + $0xc0] sm:%s248]
                %282 = vst [vmem:[%s256 + $0x60] sm:%s248] %v281
                %v283 = vld [vmem:[%s255 + $0xd0] sm:%s248]
                %284 = vst [vmem:[%s256 + $0x68] sm:%s248] %v283
                %v285 = vld [vmem:[%s255 + $0xe0] sm:%s248]
                %286 = vst [vmem:[%s256 + $0x70] sm:%s248] %v285
                %v287 = vld [vmem:[%s255 + $0xf0] sm:%s248]
                %288 = vst [vmem:[%s256 + $0x78] sm:%s248] %v287
                %v289 = vld [vmem:[%s255 + $0x100] sm:%s248]
                %290 = vst [vmem:[%s256 + $0x80] sm:%s248] %v289
                %v291 = vld [vmem:[%s255 + $0x110] sm:%s248]
                %292 = vst [vmem:[%s256 + $0x88] sm:%s248] %v291
                %v293 = vld [vmem:[%s255 + $0x120] sm:%s248]
                %294 = vst [vmem:[%s256 + $0x90] sm:%s248] %v293
                %v295 = vld [vmem:[%s255 + $0x130] sm:%s248]
                %296 = vst [vmem:[%s256 + $0x98] sm:%s248] %v295
              $region37: #{tpu_custom_call.1} parent=31 // loop_footer
                %s254 = sadd.s32 1, %s250
              $region38: #{tpu_custom_call.1} parent=31 // loop_footer_branch
                %249 = sbr.rel target = $region34
              $region39: #{tpu_custom_call.1} parent=31 // loop_exit
                _
            $region32: #{tpu_custom_call.1} parent=23 // pred_fallthru
              _
          $region24: #{tpu_custom_call.1} parent=19 // pred_fallthru
            _
          %349 = vnop
        $region20: #{tpu_custom_call.1} parent=15 // pred_fallthru
          _
        // Predicated region
        $region55: #{tpu_custom_call.1} parent=15 // pred_check
          %p350 = pneg %p89
        $region56: #{tpu_custom_call.1} parent=15 // pred_check_branch
          %352 = sbr.rel (%p350) target = $region58
        $region57: #{tpu_custom_call.1} parent=15 // pred_region
          %s353 = sand.u32 %s79, 1
          %s354 = sand.u32 %s79, 1
          %s355 = smul.addr %s354, 160
          %s356 = scalar_lea.vmem [#allocation3], %s355
          %s357 = sadd.s32 %s23, 1
          %s358 = smul.addr %s357, 40
          %s359 = sadd.s32 %s22, %s358
          %s360 = smul.addr %s21, 320
          %s361 = sadd.s32 %s359, %s360
          %s362 = smul.addr %s361, 8
          %s363 = scalar_lea.vmem %s1, %s362
          // Predicated region
          $region59: #{tpu_custom_call.1} parent=57 // pred_check
            _
          $region60: #{tpu_custom_call.1} parent=57 // pred_check_branch
            %365 = sbr.rel (0) target = $region62
          $region61: #{tpu_custom_call.1} parent=57 // pred_region
            // Predicated region
            $region63: #{tpu_custom_call.1} parent=61 // pred_check
              _
            $region64: #{tpu_custom_call.1} parent=61 // pred_check_branch
              %367 = sbr.rel (0) target = $region66
            $region65: #{tpu_custom_call.1} parent=61 // pred_region
              // Predicated region
              $region78: #{tpu_custom_call.1} parent=65 // pred_check
                _
              $region79: #{tpu_custom_call.1} parent=65 // pred_check_branch
                %421 = sbr.rel (0) target = $region81
              $region80: #{tpu_custom_call.1} parent=65 // pred_region
                loop: start=0, step=1, limit=1
                $region82: #{tpu_custom_call.1} parent=80 // loop_pre_header
                  _
                $region83: #{tpu_custom_call.1} parent=80 // loop_header
                  %s423 = sphi 0, %s427
                  %p424 = scmp.ge.s32.totalorder %s423, 1
                  %s428 = sphi %s363, %s363
                  %s429 = sphi %s356, %s356
                $region84: #{tpu_custom_call.1} parent=80 // loop_header_branch
                  %426 = sbr.rel (%p424) target = $region88
                $region85: #{tpu_custom_call.1} parent=80 // loop_body
                  %v430 = vld [vmem:[%s428] sm:$0xff]
                  %431 = vst [vmem:[%s429] sm:$0xff] %v430
                  %v432 = vld [vmem:[%s428 + $0x10] sm:$0xff]
                  %433 = vst [vmem:[%s429 + $0x8] sm:$0xff] %v432
                  %v434 = vld [vmem:[%s428 + $0x20] sm:$0xff]
                  %435 = vst [vmem:[%s429 + $0x10] sm:$0xff] %v434
                  %v436 = vld [vmem:[%s428 + $0x30] sm:$0xff]
                  %437 = vst [vmem:[%s429 + $0x18] sm:$0xff] %v436
                  %v438 = vld [vmem:[%s428 + $0x40] sm:$0xff]
                  %439 = vst [vmem:[%s429 + $0x20] sm:$0xff] %v438
                  %v440 = vld [vmem:[%s428 + $0x50] sm:$0xff]
                  %441 = vst [vmem:[%s429 + $0x28] sm:$0xff] %v440
                  %v442 = vld [vmem:[%s428 + $0x60] sm:$0xff]
                  %443 = vst [vmem:[%s429 + $0x30] sm:$0xff] %v442
                  %v444 = vld [vmem:[%s428 + $0x70] sm:$0xff]
                  %445 = vst [vmem:[%s429 + $0x38] sm:$0xff] %v444
                  %v446 = vld [vmem:[%s428 + $0x80] sm:$0xff]
                  %447 = vst [vmem:[%s429 + $0x40] sm:$0xff] %v446
                  %v448 = vld [vmem:[%s428 + $0x90] sm:$0xff]
                  %449 = vst [vmem:[%s429 + $0x48] sm:$0xff] %v448
                  %v450 = vld [vmem:[%s428 + $0xa0] sm:$0xff]
                  %451 = vst [vmem:[%s429 + $0x50] sm:$0xff] %v450
                  %v452 = vld [vmem:[%s428 + $0xb0] sm:$0xff]
                  %453 = vst [vmem:[%s429 + $0x58] sm:$0xff] %v452
                  %v454 = vld [vmem:[%s428 + $0xc0] sm:$0xff]
                  %455 = vst [vmem:[%s429 + $0x60] sm:$0xff] %v454
                  %v456 = vld [vmem:[%s428 + $0xd0] sm:$0xff]
                  %457 = vst [vmem:[%s429 + $0x68] sm:$0xff] %v456
                  %v458 = vld [vmem:[%s428 + $0xe0] sm:$0xff]
                  %459 = vst [vmem:[%s429 + $0x70] sm:$0xff] %v458
                  %v460 = vld [vmem:[%s428 + $0xf0] sm:$0xff]
                  %461 = vst [vmem:[%s429 + $0x78] sm:$0xff] %v460
                  %v462 = vld [vmem:[%s428 + $0x100] sm:$0xff]
                  %463 = vst [vmem:[%s429 + $0x80] sm:$0xff] %v462
                  %v464 = vld [vmem:[%s428 + $0x110] sm:$0xff]
                  %465 = vst [vmem:[%s429 + $0x88] sm:$0xff] %v464
                  %v466 = vld [vmem:[%s428 + $0x120] sm:$0xff]
                  %467 = vst [vmem:[%s429 + $0x90] sm:$0xff] %v466
                  %v468 = vld [vmem:[%s428 + $0x130] sm:$0xff]
                  %469 = vst [vmem:[%s429 + $0x98] sm:$0xff] %v468
                $region86: #{tpu_custom_call.1} parent=80 // loop_footer
                  %s427 = sadd.s32 1, %s423
                $region87: #{tpu_custom_call.1} parent=80 // loop_footer_branch
                  %422 = sbr.rel target = $region83
                $region88: #{tpu_custom_call.1} parent=80 // loop_exit
                  _
              $region81: #{tpu_custom_call.1} parent=65 // pred_fallthru
                _
              // Predicated region
              $region89: #{tpu_custom_call.1} parent=65 // pred_check
                _
              $region90: #{tpu_custom_call.1} parent=65 // pred_check_branch
                %471 = sbr.rel target = $region92
              $region91: #{tpu_custom_call.1} parent=65 // pred_region
                _
              $region92: #{tpu_custom_call.1} parent=65 // pred_fallthru
                _
            $region66: #{tpu_custom_call.1} parent=61 // pred_fallthru
              _
            // Predicated region
            $region67: #{tpu_custom_call.1} parent=61 // pred_check
              _
            $region68: #{tpu_custom_call.1} parent=61 // pred_check_branch
              %369 = sbr.rel target = $region70
            $region69: #{tpu_custom_call.1} parent=61 // pred_region
              %s371 = ssub.s32 256, 1
              loop: start=0, step=1, limit=1
              $region71: #{tpu_custom_call.1} parent=69 // loop_pre_header
                _
              $region72: #{tpu_custom_call.1} parent=69 // loop_header
                %s373 = sphi 0, %s377
                %p374 = scmp.ge.s32.totalorder %s373, 1
                %s378 = sphi %s363, %s363
                %s379 = sphi %s356, %s356
              $region73: #{tpu_custom_call.1} parent=69 // loop_header_branch
                %376 = sbr.rel (%p374) target = $region77
              $region74: #{tpu_custom_call.1} parent=69 // loop_body
                %v380 = vld [vmem:[%s378] sm:%s371]
                %381 = vst [vmem:[%s379] sm:%s371] %v380
                %v382 = vld [vmem:[%s378 + $0x10] sm:%s371]
                %383 = vst [vmem:[%s379 + $0x8] sm:%s371] %v382
                %v384 = vld [vmem:[%s378 + $0x20] sm:%s371]
                %385 = vst [vmem:[%s379 + $0x10] sm:%s371] %v384
                %v386 = vld [vmem:[%s378 + $0x30] sm:%s371]
                %387 = vst [vmem:[%s379 + $0x18] sm:%s371] %v386
                %v388 = vld [vmem:[%s378 + $0x40] sm:%s371]
                %389 = vst [vmem:[%s379 + $0x20] sm:%s371] %v388
                %v390 = vld [vmem:[%s378 + $0x50] sm:%s371]
                %391 = vst [vmem:[%s379 + $0x28] sm:%s371] %v390
                %v392 = vld [vmem:[%s378 + $0x60] sm:%s371]
                %393 = vst [vmem:[%s379 + $0x30] sm:%s371] %v392
                %v394 = vld [vmem:[%s378 + $0x70] sm:%s371]
                %395 = vst [vmem:[%s379 + $0x38] sm:%s371] %v394
                %v396 = vld [vmem:[%s378 + $0x80] sm:%s371]
                %397 = vst [vmem:[%s379 + $0x40] sm:%s371] %v396
                %v398 = vld [vmem:[%s378 + $0x90] sm:%s371]
                %399 = vst [vmem:[%s379 + $0x48] sm:%s371] %v398
                %v400 = vld [vmem:[%s378 + $0xa0] sm:%s371]
                %401 = vst [vmem:[%s379 + $0x50] sm:%s371] %v400
                %v402 = vld [vmem:[%s378 + $0xb0] sm:%s371]
                %403 = vst [vmem:[%s379 + $0x58] sm:%s371] %v402
                %v404 = vld [vmem:[%s378 + $0xc0] sm:%s371]
                %405 = vst [vmem:[%s379 + $0x60] sm:%s371] %v404
                %v406 = vld [vmem:[%s378 + $0xd0] sm:%s371]
                %407 = vst [vmem:[%s379 + $0x68] sm:%s371] %v406
                %v408 = vld [vmem:[%s378 + $0xe0] sm:%s371]
                %409 = vst [vmem:[%s379 + $0x70] sm:%s371] %v408
                %v410 = vld [vmem:[%s378 + $0xf0] sm:%s371]
                %411 = vst [vmem:[%s379 + $0x78] sm:%s371] %v410
                %v412 = vld [vmem:[%s378 + $0x100] sm:%s371]
                %413 = vst [vmem:[%s379 + $0x80] sm:%s371] %v412
                %v414 = vld [vmem:[%s378 + $0x110] sm:%s371]
                %415 = vst [vmem:[%s379 + $0x88] sm:%s371] %v414
                %v416 = vld [vmem:[%s378 + $0x120] sm:%s371]
                %417 = vst [vmem:[%s379 + $0x90] sm:%s371] %v416
                %v418 = vld [vmem:[%s378 + $0x130] sm:%s371]
                %419 = vst [vmem:[%s379 + $0x98] sm:%s371] %v418
              $region75: #{tpu_custom_call.1} parent=69 // loop_footer
                %s377 = sadd.s32 1, %s373
              $region76: #{tpu_custom_call.1} parent=69 // loop_footer_branch
                %372 = sbr.rel target = $region72
              $region77: #{tpu_custom_call.1} parent=69 // loop_exit
                _
            $region70: #{tpu_custom_call.1} parent=61 // pred_fallthru
              _
          $region62: #{tpu_custom_call.1} parent=57 // pred_fallthru
            _
          %472 = vnop
        $region58: #{tpu_custom_call.1} parent=15 // pred_fallthru
          _
        // Predicated region
        $region93: #{tpu_custom_call.1} parent=15 // pred_check
          %p473 = pneg %p121
        $region94: #{tpu_custom_call.1} parent=15 // pred_check_branch
          %475 = sbr.rel (%p473) target = $region96
        $region95: #{tpu_custom_call.1} parent=15 // pred_region
          %s476 = sand.u32 %s111, 1
          %s477 = sand.u32 %s111, 1
          %s478 = smul.addr %s477, 160
          %s479 = scalar_lea.vmem [#allocation4], %s478
          %s480 = sadd.s32 %s23, 2
          %s481 = smul.addr %s480, 40
          %s482 = sadd.s32 %s22, %s481
          %s483 = smul.addr %s21, 320
          %s484 = sadd.s32 %s482, %s483
          %s485 = smul.addr %s484, 8
          %s486 = scalar_lea.vmem %s2, %s485
          // Predicated region
          $region97: #{tpu_custom_call.1} parent=95 // pred_check
            _
          $region98: #{tpu_custom_call.1} parent=95 // pred_check_branch
            %488 = sbr.rel (0) target = $region100
          $region99: #{tpu_custom_call.1} parent=95 // pred_region
            // Predicated region
            $region101: #{tpu_custom_call.1} parent=99 // pred_check
              _
            $region102: #{tpu_custom_call.1} parent=99 // pred_check_branch
              %490 = sbr.rel (0) target = $region104
            $region103: #{tpu_custom_call.1} parent=99 // pred_region
              // Predicated region
              $region116: #{tpu_custom_call.1} parent=103 // pred_check
                _
              $region117: #{tpu_custom_call.1} parent=103 // pred_check_branch
                %544 = sbr.rel (0) target = $region119
              $region118: #{tpu_custom_call.1} parent=103 // pred_region
                loop: start=0, step=1, limit=1
                $region120: #{tpu_custom_call.1} parent=118 // loop_pre_header
                  _
                $region121: #{tpu_custom_call.1} parent=118 // loop_header
                  %s546 = sphi 0, %s550
                  %p547 = scmp.ge.s32.totalorder %s546, 1
                  %s551 = sphi %s486, %s486
                  %s552 = sphi %s479, %s479
                $region122: #{tpu_custom_call.1} parent=118 // loop_header_branch
                  %549 = sbr.rel (%p547) target = $region126
                $region123: #{tpu_custom_call.1} parent=118 // loop_body
                  %v553 = vld [vmem:[%s551] sm:$0xff]
                  %554 = vst [vmem:[%s552] sm:$0xff] %v553
                  %v555 = vld [vmem:[%s551 + $0x10] sm:$0xff]
                  %556 = vst [vmem:[%s552 + $0x8] sm:$0xff] %v555
                  %v557 = vld [vmem:[%s551 + $0x20] sm:$0xff]
                  %558 = vst [vmem:[%s552 + $0x10] sm:$0xff] %v557
                  %v559 = vld [vmem:[%s551 + $0x30] sm:$0xff]
                  %560 = vst [vmem:[%s552 + $0x18] sm:$0xff] %v559
                  %v561 = vld [vmem:[%s551 + $0x40] sm:$0xff]
                  %562 = vst [vmem:[%s552 + $0x20] sm:$0xff] %v561
                  %v563 = vld [vmem:[%s551 + $0x50] sm:$0xff]
                  %564 = vst [vmem:[%s552 + $0x28] sm:$0xff] %v563
                  %v565 = vld [vmem:[%s551 + $0x60] sm:$0xff]
                  %566 = vst [vmem:[%s552 + $0x30] sm:$0xff] %v565
                  %v567 = vld [vmem:[%s551 + $0x70] sm:$0xff]
                  %568 = vst [vmem:[%s552 + $0x38] sm:$0xff] %v567
                  %v569 = vld [vmem:[%s551 + $0x80] sm:$0xff]
                  %570 = vst [vmem:[%s552 + $0x40] sm:$0xff] %v569
                  %v571 = vld [vmem:[%s551 + $0x90] sm:$0xff]
                  %572 = vst [vmem:[%s552 + $0x48] sm:$0xff] %v571
                  %v573 = vld [vmem:[%s551 + $0xa0] sm:$0xff]
                  %574 = vst [vmem:[%s552 + $0x50] sm:$0xff] %v573
                  %v575 = vld [vmem:[%s551 + $0xb0] sm:$0xff]
                  %576 = vst [vmem:[%s552 + $0x58] sm:$0xff] %v575
                  %v577 = vld [vmem:[%s551 + $0xc0] sm:$0xff]
                  %578 = vst [vmem:[%s552 + $0x60] sm:$0xff] %v577
                  %v579 = vld [vmem:[%s551 + $0xd0] sm:$0xff]
                  %580 = vst [vmem:[%s552 + $0x68] sm:$0xff] %v579
                  %v581 = vld [vmem:[%s551 + $0xe0] sm:$0xff]
                  %582 = vst [vmem:[%s552 + $0x70] sm:$0xff] %v581
                  %v583 = vld [vmem:[%s551 + $0xf0] sm:$0xff]
                  %584 = vst [vmem:[%s552 + $0x78] sm:$0xff] %v583
                  %v585 = vld [vmem:[%s551 + $0x100] sm:$0xff]
                  %586 = vst [vmem:[%s552 + $0x80] sm:$0xff] %v585
                  %v587 = vld [vmem:[%s551 + $0x110] sm:$0xff]
                  %588 = vst [vmem:[%s552 + $0x88] sm:$0xff] %v587
                  %v589 = vld [vmem:[%s551 + $0x120] sm:$0xff]
                  %590 = vst [vmem:[%s552 + $0x90] sm:$0xff] %v589
                  %v591 = vld [vmem:[%s551 + $0x130] sm:$0xff]
                  %592 = vst [vmem:[%s552 + $0x98] sm:$0xff] %v591
                $region124: #{tpu_custom_call.1} parent=118 // loop_footer
                  %s550 = sadd.s32 1, %s546
                $region125: #{tpu_custom_call.1} parent=118 // loop_footer_branch
                  %545 = sbr.rel target = $region121
                $region126: #{tpu_custom_call.1} parent=118 // loop_exit
                  _
              $region119: #{tpu_custom_call.1} parent=103 // pred_fallthru
                _
              // Predicated region
              $region127: #{tpu_custom_call.1} parent=103 // pred_check
                _
              $region128: #{tpu_custom_call.1} parent=103 // pred_check_branch
                %594 = sbr.rel target = $region130
              $region129: #{tpu_custom_call.1} parent=103 // pred_region
                _
              $region130: #{tpu_custom_call.1} parent=103 // pred_fallthru
                _
            $region104: #{tpu_custom_call.1} parent=99 // pred_fallthru
              _
            // Predicated region
            $region105: #{tpu_custom_call.1} parent=99 // pred_check
              _
            $region106: #{tpu_custom_call.1} parent=99 // pred_check_branch
              %492 = sbr.rel target = $region108
            $region107: #{tpu_custom_call.1} parent=99 // pred_region
              %s494 = ssub.s32 256, 1
              loop: start=0, step=1, limit=1
              $region109: #{tpu_custom_call.1} parent=107 // loop_pre_header
                _
              $region110: #{tpu_custom_call.1} parent=107 // loop_header
                %s496 = sphi 0, %s500
                %p497 = scmp.ge.s32.totalorder %s496, 1
                %s501 = sphi %s486, %s486
                %s502 = sphi %s479, %s479
              $region111: #{tpu_custom_call.1} parent=107 // loop_header_branch
                %499 = sbr.rel (%p497) target = $region115
              $region112: #{tpu_custom_call.1} parent=107 // loop_body
                %v503 = vld [vmem:[%s501] sm:%s494]
                %504 = vst [vmem:[%s502] sm:%s494] %v503
                %v505 = vld [vmem:[%s501 + $0x10] sm:%s494]
                %506 = vst [vmem:[%s502 + $0x8] sm:%s494] %v505
                %v507 = vld [vmem:[%s501 + $0x20] sm:%s494]
                %508 = vst [vmem:[%s502 + $0x10] sm:%s494] %v507
                %v509 = vld [vmem:[%s501 + $0x30] sm:%s494]
                %510 = vst [vmem:[%s502 + $0x18] sm:%s494] %v509
                %v511 = vld [vmem:[%s501 + $0x40] sm:%s494]
                %512 = vst [vmem:[%s502 + $0x20] sm:%s494] %v511
                %v513 = vld [vmem:[%s501 + $0x50] sm:%s494]
                %514 = vst [vmem:[%s502 + $0x28] sm:%s494] %v513
                %v515 = vld [vmem:[%s501 + $0x60] sm:%s494]
                %516 = vst [vmem:[%s502 + $0x30] sm:%s494] %v515
                %v517 = vld [vmem:[%s501 + $0x70] sm:%s494]
                %518 = vst [vmem:[%s502 + $0x38] sm:%s494] %v517
                %v519 = vld [vmem:[%s501 + $0x80] sm:%s494]
                %520 = vst [vmem:[%s502 + $0x40] sm:%s494] %v519
                %v521 = vld [vmem:[%s501 + $0x90] sm:%s494]
                %522 = vst [vmem:[%s502 + $0x48] sm:%s494] %v521
                %v523 = vld [vmem:[%s501 + $0xa0] sm:%s494]
                %524 = vst [vmem:[%s502 + $0x50] sm:%s494] %v523
                %v525 = vld [vmem:[%s501 + $0xb0] sm:%s494]
                %526 = vst [vmem:[%s502 + $0x58] sm:%s494] %v525
                %v527 = vld [vmem:[%s501 + $0xc0] sm:%s494]
                %528 = vst [vmem:[%s502 + $0x60] sm:%s494] %v527
                %v529 = vld [vmem:[%s501 + $0xd0] sm:%s494]
                %530 = vst [vmem:[%s502 + $0x68] sm:%s494] %v529
                %v531 = vld [vmem:[%s501 + $0xe0] sm:%s494]
                %532 = vst [vmem:[%s502 + $0x70] sm:%s494] %v531
                %v533 = vld [vmem:[%s501 + $0xf0] sm:%s494]
                %534 = vst [vmem:[%s502 + $0x78] sm:%s494] %v533
                %v535 = vld [vmem:[%s501 + $0x100] sm:%s494]
                %536 = vst [vmem:[%s502 + $0x80] sm:%s494] %v535
                %v537 = vld [vmem:[%s501 + $0x110] sm:%s494]
                %538 = vst [vmem:[%s502 + $0x88] sm:%s494] %v537
                %v539 = vld [vmem:[%s501 + $0x120] sm:%s494]
                %540 = vst [vmem:[%s502 + $0x90] sm:%s494] %v539
                %v541 = vld [vmem:[%s501 + $0x130] sm:%s494]
                %542 = vst [vmem:[%s502 + $0x98] sm:%s494] %v541
              $region113: #{tpu_custom_call.1} parent=107 // loop_footer
                %s500 = sadd.s32 1, %s496
              $region114: #{tpu_custom_call.1} parent=107 // loop_footer_branch
                %495 = sbr.rel target = $region110
              $region115: #{tpu_custom_call.1} parent=107 // loop_exit
                _
            $region108: #{tpu_custom_call.1} parent=99 // pred_fallthru
              _
          $region100: #{tpu_custom_call.1} parent=95 // pred_fallthru
            _
          %595 = vnop
        $region96: #{tpu_custom_call.1} parent=15 // pred_fallthru
          _
        // Predicated region
        $region131: #{tpu_custom_call.1} parent=15 // pred_check
          %p596 = pneg %p147
        $region132: #{tpu_custom_call.1} parent=15 // pred_check_branch
          %598 = sbr.rel (%p596) target = $region134
        $region133: #{tpu_custom_call.1} parent=15 // pred_region
          %s599 = sand.u32 %s137, 1
          %s600 = sand.u32 %s137, 1
          %s601 = smul.addr %s600, 32
          %s602 = scalar_lea.vmem [#allocation5], %s601
          %s603 = smul.addr %s22, 8
          %s604 = scalar_lea.vmem %s3, %s603
          // Predicated region
          $region135: #{tpu_custom_call.1} parent=133 // pred_check
            _
          $region136: #{tpu_custom_call.1} parent=133 // pred_check_branch
            %606 = sbr.rel (0) target = $region138
          $region137: #{tpu_custom_call.1} parent=133 // pred_region
            // Predicated region
            $region139: #{tpu_custom_call.1} parent=137 // pred_check
              _
            $region140: #{tpu_custom_call.1} parent=137 // pred_check_branch
              %608 = sbr.rel (0) target = $region142
            $region141: #{tpu_custom_call.1} parent=137 // pred_region
              // Predicated region
              $region154: #{tpu_custom_call.1} parent=141 // pred_check
                _
              $region155: #{tpu_custom_call.1} parent=141 // pred_check_branch
                %630 = sbr.rel (0) target = $region157
              $region156: #{tpu_custom_call.1} parent=141 // pred_region
                loop: start=0, step=1, limit=1
                $region158: #{tpu_custom_call.1} parent=156 // loop_pre_header
                  _
                $region159: #{tpu_custom_call.1} parent=156 // loop_header
                  %s632 = sphi 0, %s636
                  %p633 = scmp.ge.s32.totalorder %s632, 1
                  %s637 = sphi %s604, %s604
                  %s638 = sphi %s602, %s602
                $region160: #{tpu_custom_call.1} parent=156 // loop_header_branch
                  %635 = sbr.rel (%p633) target = $region164
                $region161: #{tpu_custom_call.1} parent=156 // loop_body
                  %v639 = vld [vmem:[%s637] sm:$0xff]
                  %640 = vst [vmem:[%s638] sm:$0xff] %v639
                  %v641 = vld [vmem:[%s637 + $0x10] sm:$0xff]
                  %642 = vst [vmem:[%s638 + $0x8] sm:$0xff] %v641
                  %v643 = vld [vmem:[%s637 + $0x20] sm:$0xff]
                  %644 = vst [vmem:[%s638 + $0x10] sm:$0xff] %v643
                  %v645 = vld [vmem:[%s637 + $0x30] sm:$0xff]
                  %646 = vst [vmem:[%s638 + $0x18] sm:$0xff] %v645
                $region162: #{tpu_custom_call.1} parent=156 // loop_footer
                  %s636 = sadd.s32 1, %s632
                $region163: #{tpu_custom_call.1} parent=156 // loop_footer_branch
                  %631 = sbr.rel target = $region159
                $region164: #{tpu_custom_call.1} parent=156 // loop_exit
                  _
              $region157: #{tpu_custom_call.1} parent=141 // pred_fallthru
                _
              // Predicated region
              $region165: #{tpu_custom_call.1} parent=141 // pred_check
                _
              $region166: #{tpu_custom_call.1} parent=141 // pred_check_branch
                %648 = sbr.rel target = $region168
              $region167: #{tpu_custom_call.1} parent=141 // pred_region
                _
              $region168: #{tpu_custom_call.1} parent=141 // pred_fallthru
                _
            $region142: #{tpu_custom_call.1} parent=137 // pred_fallthru
              _
            // Predicated region
            $region143: #{tpu_custom_call.1} parent=137 // pred_check
              _
            $region144: #{tpu_custom_call.1} parent=137 // pred_check_branch
              %610 = sbr.rel target = $region146
            $region145: #{tpu_custom_call.1} parent=137 // pred_region
              %s612 = ssub.s32 256, 1
              loop: start=0, step=1, limit=1
              $region147: #{tpu_custom_call.1} parent=145 // loop_pre_header
                _
              $region148: #{tpu_custom_call.1} parent=145 // loop_header
                %s614 = sphi 0, %s618
                %p615 = scmp.ge.s32.totalorder %s614, 1
                %s619 = sphi %s604, %s604
                %s620 = sphi %s602, %s602
              $region149: #{tpu_custom_call.1} parent=145 // loop_header_branch
                %617 = sbr.rel (%p615) target = $region153
              $region150: #{tpu_custom_call.1} parent=145 // loop_body
                %v621 = vld [vmem:[%s619] sm:%s612]
                %622 = vst [vmem:[%s620] sm:%s612] %v621
                %v623 = vld [vmem:[%s619 + $0x10] sm:%s612]
                %624 = vst [vmem:[%s620 + $0x8] sm:%s612] %v623
                %v625 = vld [vmem:[%s619 + $0x20] sm:%s612]
                %626 = vst [vmem:[%s620 + $0x10] sm:%s612] %v625
                %v627 = vld [vmem:[%s619 + $0x30] sm:%s612]
                %628 = vst [vmem:[%s620 + $0x18] sm:%s612] %v627
              $region151: #{tpu_custom_call.1} parent=145 // loop_footer
                %s618 = sadd.s32 1, %s614
              $region152: #{tpu_custom_call.1} parent=145 // loop_footer_branch
                %613 = sbr.rel target = $region148
              $region153: #{tpu_custom_call.1} parent=145 // loop_exit
                _
            $region146: #{tpu_custom_call.1} parent=137 // pred_fallthru
              _
          $region138: #{tpu_custom_call.1} parent=133 // pred_fallthru
            _
          %649 = vnop
        $region134: #{tpu_custom_call.1} parent=15 // pred_fallthru
          _
        // Predicated region
        $region169: #{tpu_custom_call.1} parent=15 // pred_check
          %p650 = pneg %p173
        $region170: #{tpu_custom_call.1} parent=15 // pred_check_branch
          %652 = sbr.rel (%p650) target = $region172
        $region171: #{tpu_custom_call.1} parent=15 // pred_region
          %p653 = scmp.lt.s32.totalorder %s22, 1
          %s654 = scalar_select %p653, %s22, 1
          %s655 = scalar_lea.vmem %s4, %s654
        $region172: #{tpu_custom_call.1} parent=15 // pred_fallthru
          _
      $region16: #{tpu_custom_call.1} parent=5 // pred_fallthru
        _
      %p656 = scmp.le.s32.totalorder 1, %s14
      %p657 = scmp.lt.s32.totalorder %s14, 25
      %p658 = pnand %p656, %p657
      %p659 = pneg %p658
      // Predicated region
      $region173: #{tpu_custom_call.1} parent=5 // pred_check
        _
      $region174: #{tpu_custom_call.1} parent=5 // pred_check_branch
        %661 = sbr.rel (%p658) target = $region176
      $region175: #{tpu_custom_call.1} parent=5 // pred_region
        %s662 = ssub.s32 %s14, 1
        %s663 = sand.u32 %s50, 1
        %s664 = sand.u32 %s50, 1
        %s665 = smul.addr %s664, 160
        %s666 = scalar_lea.vmem [#allocation2], %s665
        // Predicated region
        $region177: #{tpu_custom_call.1} parent=175 // pred_check
          %p667 = pneg %p63
        $region178: #{tpu_custom_call.1} parent=175 // pred_check_branch
          %669 = sbr.rel (%p667) target = $region180
        $region179: #{tpu_custom_call.1} parent=175 // pred_region
          _
        $region180: #{tpu_custom_call.1} parent=175 // pred_fallthru
          _
        %s670 = sand.u32 %s82, 1
        %s671 = sand.u32 %s82, 1
        %s672 = smul.addr %s671, 160
        %s673 = scalar_lea.vmem [#allocation3], %s672
        // Predicated region
        $region181: #{tpu_custom_call.1} parent=175 // pred_check
          %p674 = pneg %p95
        $region182: #{tpu_custom_call.1} parent=175 // pred_check_branch
          %676 = sbr.rel (%p674) target = $region184
        $region183: #{tpu_custom_call.1} parent=175 // pred_region
          _
        $region184: #{tpu_custom_call.1} parent=175 // pred_fallthru
          _
        %s677 = sand.u32 %s114, 1
        %s678 = sand.u32 %s114, 1
        %s679 = smul.addr %s678, 160
        %s680 = scalar_lea.vmem [#allocation4], %s679
        // Predicated region
        $region185: #{tpu_custom_call.1} parent=175 // pred_check
          %p681 = pneg %p127
        $region186: #{tpu_custom_call.1} parent=175 // pred_check_branch
          %683 = sbr.rel (%p681) target = $region188
        $region187: #{tpu_custom_call.1} parent=175 // pred_region
          _
        $region188: #{tpu_custom_call.1} parent=175 // pred_fallthru
          _
        %s684 = sand.u32 %s140, 1
        %s685 = sand.u32 %s140, 1
        %s686 = smul.addr %s685, 32
        %s687 = scalar_lea.vmem [#allocation5], %s686
        // Predicated region
        $region189: #{tpu_custom_call.1} parent=175 // pred_check
          %p688 = pneg %p153
        $region190: #{tpu_custom_call.1} parent=175 // pred_check_branch
          %690 = sbr.rel (%p688) target = $region192
        $region191: #{tpu_custom_call.1} parent=175 // pred_region
          _
        $region192: #{tpu_custom_call.1} parent=175 // pred_fallthru
          _
        %s691 = sand.u32 %s50, 1
        %s692 = sand.u32 %s50, 1
        %s693 = smul.addr %s692, 160
        %s694 = scalar_lea.vmem [#allocation2], %s693
        %p695 = pneg %p63
        %p696 = pneg %p60
        %s697 = sand.u32 %s82, 1
        %s698 = sand.u32 %s82, 1
        %s699 = smul.addr %s698, 160
        %s700 = scalar_lea.vmem [#allocation3], %s699
        %p701 = pneg %p95
        %p702 = pneg %p92
        %s703 = sand.u32 %s114, 1
        %s704 = sand.u32 %s114, 1
        %s705 = smul.addr %s704, 160
        %s706 = scalar_lea.vmem [#allocation4], %s705
        %p707 = pneg %p127
        %p708 = pneg %p124
        %s709 = sand.u32 %s140, 1
        %s710 = sand.u32 %s140, 1
        %s711 = smul.addr %s710, 32
        %s712 = scalar_lea.vmem [#allocation5], %s711
        %p713 = pneg %p153
        %p714 = pneg %p150
        %p715 = scmp.lt.s32.totalorder %s25, 1
        %s716 = scalar_select %p715, %s25, 1
        %s717 = scalar_lea.vmem %s4, %s716
        %p718 = pneg %p179
        %p719 = pneg %p176
        %p720 = pneg %p209
        %p721 = pneg %p206
        %s722 = sand.u32 %s196, 1
        %s723 = scalar_lea.sflag [#allocation7], %s722
        %s724 = sand.u32 %s196, 1
        %s725 = smul.addr %s724, 64
        %s726 = scalar_lea.vmem [#allocation6], %s725
        %s727 = sadd.s32 %s26, 1
        %s728 = sadd.s32 %s26, 2
        %p729 = scmp.lt.s32.totalorder %s25, 1
        %s730 = scalar_select %p729, %s25, 1
        %s731 = scalar_lea.vmem %s4, %s730
        %v732 = vld [vmem:[%s687] sm:$0xff]
        %v733 = vld [vmem:[%s687 + $0x8] sm:$0xff]
        %v734 = vld [vmem:[%s687 + $0x10] sm:$0xff]
        %v735 = vld [vmem:[%s687 + $0x18] sm:$0x7]
        %v736 = vld [vmem:[%s731] sm:$0x1]
        loop: start=0, step=1, limit=8
        $region193: #{tpu_custom_call.1} parent=175 // loop_pre_header
          _
        $region194: #{tpu_custom_call.1} parent=175 // loop_header
          %s738 = sphi 0, %s742
          %p739 = scmp.ge.s32.totalorder %s738, 8
        $region195: #{tpu_custom_call.1} parent=175 // loop_header_branch
          %741 = sbr.rel (%p739) target = $region199
        $region196: #{tpu_custom_call.1} parent=175 // loop_body
          %v744 = vperm.slane %v736, 0
          %s746 = smul.u32 %s738, 16
          %s747 = scalar_lea.vmem %s666, %s746 [#allocation2]
          %v748 = vld [vmem:[%s747] sm:$0xff]
          %v749 = vld [vmem:[%s747 + $0x8] sm:$0x3]
          %v750 = vperm.slane %v732, 0
          %v751 = vmul.f32 %v748, %v750
          %v752 = vadd.f32 %v744, %v751
          %v753 = vperm.slane %v732, 1
          %v754 = vmul.f32 %v748, %v753
          %v755 = vmul.f32 %v749, %v753
          %vm758 = vcmask 1046528
          %v759 = vrot.slane %v754, 1
          %v760 = vrot.slane %v755, 1
          %v761 = vsel %vm758, %v759, %v760
          %v763 = vadd.f32 %v752, %v761
          %v764 = vperm.slane %v732, 2
          %v765 = vmul.f32 %v748, %v764
          %v766 = vmul.f32 %v749, %v764
          %vm769 = vcmask 1045504
          %v770 = vrot.slane %v765, 2
          %v771 = vrot.slane %v766, 2
          %v772 = vsel %vm769, %v770, %v771
          %v774 = vadd.f32 %v763, %v772
          %s775 = sadd.s32 %s738, 1
          %s776 = smul.u32 %s775, 16
          %s777 = scalar_lea.vmem %s666, %s776 [#allocation2]
          %v778 = vld [vmem:[%s777] sm:$0xff]
          %v779 = vld [vmem:[%s777 + $0x8] sm:$0x3]
          %v780 = vperm.slane %v732, 3
          %v781 = vmul.f32 %v778, %v780
          %v782 = vadd.f32 %v774, %v781
          %v783 = vperm.slane %v732, 4
          %v784 = vmul.f32 %v778, %v783
          %v785 = vmul.f32 %v779, %v783
          %v788 = vrot.slane %v784, 1
          %v789 = vrot.slane %v785, 1
          %v790 = vsel %vm758, %v788, %v789
          %v792 = vadd.f32 %v782, %v790
          %v793 = vperm.slane %v732, 5
          %v794 = vmul.f32 %v778, %v793
          %v795 = vmul.f32 %v779, %v793
          %v798 = vrot.slane %v794, 2
          %v799 = vrot.slane %v795, 2
          %v800 = vsel %vm769, %v798, %v799
          %v802 = vadd.f32 %v792, %v800
          %s803 = sadd.s32 %s738, 2
          %s804 = smul.u32 %s803, 16
          %s805 = scalar_lea.vmem %s666, %s804 [#allocation2]
          %v806 = vld [vmem:[%s805] sm:$0xff]
          %v807 = vld [vmem:[%s805 + $0x8] sm:$0x3]
          %v808 = vperm.slane %v732, 6
          %v809 = vmul.f32 %v806, %v808
          %v810 = vadd.f32 %v802, %v809
          %v811 = vperm.slane %v732, 7
          %v812 = vmul.f32 %v806, %v811
          %v813 = vmul.f32 %v807, %v811
          %v816 = vrot.slane %v812, 1
          %v817 = vrot.slane %v813, 1
          %v818 = vsel %vm758, %v816, %v817
          %v820 = vadd.f32 %v810, %v818
          %v821 = vperm.slane %v733, 0
          %v822 = vmul.f32 %v806, %v821
          %v823 = vmul.f32 %v807, %v821
          %v826 = vrot.slane %v822, 2
          %v827 = vrot.slane %v823, 2
          %v828 = vsel %vm769, %v826, %v827
          %v830 = vadd.f32 %v820, %v828
          %s831 = scalar_lea.vmem %s673, %s746 [#allocation3]
          %v832 = vld [vmem:[%s831] sm:$0xff]
          %v833 = vld [vmem:[%s831 + $0x8] sm:$0x3]
          %v834 = vperm.slane %v733, 1
          %v835 = vmul.f32 %v832, %v834
          %v836 = vadd.f32 %v830, %v835
          %v837 = vperm.slane %v733, 2
          %v838 = vmul.f32 %v832, %v837
          %v839 = vmul.f32 %v833, %v837
          %v842 = vrot.slane %v838, 1
          %v843 = vrot.slane %v839, 1
          %v844 = vsel %vm758, %v842, %v843
          %v846 = vadd.f32 %v836, %v844
          %v847 = vperm.slane %v733, 3
          %v848 = vmul.f32 %v832, %v847
          %v849 = vmul.f32 %v833, %v847
          %v852 = vrot.slane %v848, 2
          %v853 = vrot.slane %v849, 2
          %v854 = vsel %vm769, %v852, %v853
          %v856 = vadd.f32 %v846, %v854
          %s857 = scalar_lea.vmem %s673, %s776 [#allocation3]
          %v858 = vld [vmem:[%s857] sm:$0xff]
          %v859 = vld [vmem:[%s857 + $0x8] sm:$0x3]
          %v860 = vperm.slane %v733, 4
          %v861 = vmul.f32 %v858, %v860
          %v862 = vadd.f32 %v856, %v861
          %v863 = vperm.slane %v733, 5
          %v864 = vmul.f32 %v858, %v863
          %v865 = vmul.f32 %v859, %v863
          %v868 = vrot.slane %v864, 1
          %v869 = vrot.slane %v865, 1
          %v870 = vsel %vm758, %v868, %v869
          %v872 = vadd.f32 %v862, %v870
          %v873 = vperm.slane %v733, 6
          %v874 = vmul.f32 %v858, %v873
          %v875 = vmul.f32 %v859, %v873
          %v878 = vrot.slane %v874, 2
          %v879 = vrot.slane %v875, 2
          %v880 = vsel %vm769, %v878, %v879
          %v882 = vadd.f32 %v872, %v880
          %s883 = scalar_lea.vmem %s673, %s804 [#allocation3]
          %v884 = vld [vmem:[%s883] sm:$0xff]
          %v885 = vld [vmem:[%s883 + $0x8] sm:$0x3]
          %v886 = vperm.slane %v733, 7
          %v887 = vmul.f32 %v884, %v886
          %v888 = vadd.f32 %v882, %v887
          %v889 = vperm.slane %v734, 0
          %v890 = vmul.f32 %v884, %v889
          %v891 = vmul.f32 %v885, %v889
          %v894 = vrot.slane %v890, 1
          %v895 = vrot.slane %v891, 1
          %v896 = vsel %vm758, %v894, %v895
          %v898 = vadd.f32 %v888, %v896
          %v899 = vperm.slane %v734, 1
          %v900 = vmul.f32 %v884, %v899
          %v901 = vmul.f32 %v885, %v899
          %v904 = vrot.slane %v900, 2
          %v905 = vrot.slane %v901, 2
          %v906 = vsel %vm769, %v904, %v905
          %v908 = vadd.f32 %v898, %v906
          %s909 = scalar_lea.vmem %s680, %s746 [#allocation4]
          %v910 = vld [vmem:[%s909] sm:$0xff]
          %v911 = vld [vmem:[%s909 + $0x8] sm:$0x3]
          %v912 = vperm.slane %v734, 2
          %v913 = vmul.f32 %v910, %v912
          %v914 = vadd.f32 %v908, %v913
          %v915 = vperm.slane %v734, 3
          %v916 = vmul.f32 %v910, %v915
          %v917 = vmul.f32 %v911, %v915
          %v920 = vrot.slane %v916, 1
          %v921 = vrot.slane %v917, 1
          %v922 = vsel %vm758, %v920, %v921
          %v924 = vadd.f32 %v914, %v922
          %v925 = vperm.slane %v734, 4
          %v926 = vmul.f32 %v910, %v925
          %v927 = vmul.f32 %v911, %v925
          %v930 = vrot.slane %v926, 2
          %v931 = vrot.slane %v927, 2
          %v932 = vsel %vm769, %v930, %v931
          %v934 = vadd.f32 %v924, %v932
          %s935 = scalar_lea.vmem %s680, %s776 [#allocation4]
          %v936 = vld [vmem:[%s935] sm:$0xff]
          %v937 = vld [vmem:[%s935 + $0x8] sm:$0x3]
          %v938 = vperm.slane %v734, 5
          %v939 = vmul.f32 %v936, %v938
          %v940 = vadd.f32 %v934, %v939
          %v941 = vperm.slane %v734, 6
          %v942 = vmul.f32 %v936, %v941
          %v943 = vmul.f32 %v937, %v941
          %v946 = vrot.slane %v942, 1
          %v947 = vrot.slane %v943, 1
          %v948 = vsel %vm758, %v946, %v947
          %v950 = vadd.f32 %v940, %v948
          %v951 = vperm.slane %v734, 7
          %v952 = vmul.f32 %v936, %v951
          %v953 = vmul.f32 %v937, %v951
          %v956 = vrot.slane %v952, 2
          %v957 = vrot.slane %v953, 2
          %v958 = vsel %vm769, %v956, %v957
          %v960 = vadd.f32 %v950, %v958
          %s961 = scalar_lea.vmem %s680, %s804 [#allocation4]
          %v962 = vld [vmem:[%s961] sm:$0xff]
          %v963 = vld [vmem:[%s961 + $0x8] sm:$0x3]
          %v964 = vperm.slane %v735, 0
          %v965 = vmul.f32 %v962, %v964
          %v966 = vadd.f32 %v960, %v965
          %v967 = vperm.slane %v735, 1
          %v968 = vmul.f32 %v962, %v967
          %v969 = vmul.f32 %v963, %v967
          %v972 = vrot.slane %v968, 1
          %v973 = vrot.slane %v969, 1
          %v974 = vsel %vm758, %v972, %v973
          %v976 = vadd.f32 %v966, %v974
          %v977 = vperm.slane %v735, 2
          %v978 = vmul.f32 %v962, %v977
          %v979 = vmul.f32 %v963, %v977
          %v982 = vrot.slane %v978, 2
          %v983 = vrot.slane %v979, 2
          %v984 = vsel %vm769, %v982, %v983
          %v986 = vadd.f32 %v976, %v984
          %s987 = smul.u32 %s738, 8
          %s988 = scalar_lea.vmem %s726, %s987 [#allocation6]
          %989 = vst [vmem:[%s988] sm:$0xff] %v986
        $region197: #{tpu_custom_call.1} parent=175 // loop_footer
          %s742 = sadd.s32 1, %s738
        $region198: #{tpu_custom_call.1} parent=175 // loop_footer_branch
          %737 = sbr.rel target = $region194
        $region199: #{tpu_custom_call.1} parent=175 // loop_exit
          _
        %s990 = sand.u32 %s196, 1
        %s991 = scalar_lea.sflag [#allocation7], %s990
        %s992 = sand.u32 %s196, 1
        %s993 = smul.addr %s992, 64
        %s994 = scalar_lea.vmem [#allocation6], %s993
        // Predicated region
        $region200: #{tpu_custom_call.1} parent=175 // pred_check
          %p995 = pneg %p206
        $region201: #{tpu_custom_call.1} parent=175 // pred_check_branch
          %997 = sbr.rel (%p995) target = $region203
        $region202: #{tpu_custom_call.1} parent=175 // pred_region
          %999 = vsyncadd %s991, 0
          %s1000 = smul.addr %s26, 16
          %s1001 = sadd.s32 %s25, %s1000
          %s1002 = smul.addr %s24, 96
          %s1003 = sadd.s32 %s1001, %s1002
          %s1004 = smul.addr %s1003, 8
          %s1005 = scalar_lea.hbm %s5, %s1004
          %s1006 = sshll.u32 %s994, 4
          %s1007 = int_to_ptr.vmem [resolvable:$true] %s1006
          %s1008 = sshll.u32 %s1005, 4
          %s1009 = int_to_ptr.hbm [resolvable:$true] %s1008
          %1014 = dma.vmem_to_hbm [thread:$0]  %s1007, 1024, %s1009, %s991, 128, 256, 8
        $region203: #{tpu_custom_call.1} parent=175 // pred_fallthru
          _
      $region176: #{tpu_custom_call.1} parent=5 // pred_fallthru
        _
      %p1015 = scmp.le.s32.totalorder 2, %s14
      // Predicated region
      $region204: #{tpu_custom_call.1} parent=5 // pred_check
        %p1016 = pneg %p1015
      $region205: #{tpu_custom_call.1} parent=5 // pred_check_branch
        %1018 = sbr.rel (%p1016) target = $region207
      $region206: #{tpu_custom_call.1} parent=5 // pred_region
        %s1019 = ssub.s32 %s14, 2
        // Predicated region
        $region208: #{tpu_custom_call.1} parent=206 // pred_check
          %p1020 = pneg %p212
        $region209: #{tpu_custom_call.1} parent=206 // pred_check_branch
          %1022 = sbr.rel (%p1020) target = $region211
        $region210: #{tpu_custom_call.1} parent=206 // pred_region
          %s1023 = sand.u32 %s197, 1
          %s1024 = scalar_lea.sflag [#allocation7], %s1023
          %s1025 = sand.u32 %s197, 1
          %s1026 = smul.addr %s1025, 64
          %s1027 = scalar_lea.vmem [#allocation6], %s1026
          %1029 = dma.done %s1024, 1024
        $region211: #{tpu_custom_call.1} parent=206 // pred_fallthru
          _
      $region207: #{tpu_custom_call.1} parent=5 // pred_fallthru
        _
    $region6: #{tpu_custom_call.1} parent=1 // loop_footer
      %s18 = sadd.s32 1, %s14
    $region7: #{tpu_custom_call.1} parent=1 // loop_footer_branch
      %13 = sbr.rel target = $region3
    $region8: #{tpu_custom_call.1} parent=1 // loop_exit
      _
    %1030 = vsyncpa [#allocation7], 1
    %s1031 = scalar_lea.sflag [#allocation7], 1
    %1032 = vsyncpa %s1031, 1

</llo_original>
